<compile_context>
chip_gen: v7x
topology: tpu7x:2x2x1
jax: 0.10.0
libtpu: 0.0.40
codegen_flags: <defaults>
</compile_context>

<pallas_src>
import jax
import jax.numpy as jnp
import numpy as np
from jax import lax
from jax.experimental import pallas as pl
from jax.experimental.pallas import tpu as pltpu

LANE = 128


def _rnn_chunk_kernel(s0_ref, x_ref, w1s_ref, w1x_ref, b1_ref, w2_ref, b2_ref,
                      out_ref, sfin_ref, state_scr):
    """One grid step == one chunk of TT RNN timesteps.

    Shapes per chunk:
      s0_ref:  (1, SZ)   f32            x_ref:  (TT, B, SZ) bf16 (streamed)
      w1s_ref: (SZ, H)   bf16           w1x_ref:(SZ, H)     bf16
      b1_ref:  (1, H)    f32
      w2_ref:  (H, SP+OUT_PAD) bf16     fused [w2_state | 0 | w2_out | 0]
      b2_ref:  (1, SP+OUT_PAD) f32      fused the same way
      out_ref: (TT, B, OUT_PAD) f32     per-chunk outputs (lane-dense stores)
      sfin_ref:(B, SZ)   f32            final state (resident block)
      state_scr: VMEM (B, SZ) f32       state carried across grid chunks
    """
    c = pl.program_id(0)
    tt, batch, _ = x_ref.shape
    sz = state_scr.shape[-1]
    out_pad = out_ref.shape[-1]
    sp = w2_ref.shape[-1] - out_pad      # lane offset of the output half of fused W2

    @pl.when(c == 0)
    def _():
        # state.expand(ins[0].shape): broadcast the learned (1, SZ) initial
        # state over the batch once; afterwards the state is per-row.
        state_scr[...] = jnp.broadcast_to(s0_ref[...], state_scr.shape)

    # Hoist resident operands and bias broadcasts out of the unrolled loop.
    w1s = w1s_ref[...]
    w1x = w1x_ref[...]
    w2 = w2_ref[...]
    b1 = jnp.broadcast_to(b1_ref[...], (batch, w1x.shape[-1]))
    b2 = jnp.broadcast_to(b2_ref[...], (batch, w2.shape[-1]))

    def step(t, state):
        x_bf = x_ref[t]                               # (B, SZ) bf16
        s_bf = state.astype(jnp.bfloat16)             # (B, SZ) bf16
        # First Linear + ReLU, split to avoid the lane-misaligned concat:
        #   h = cat([state, x], -1) @ W1^T + b1 == state @ W1s + x @ W1x + b1
        h = jnp.dot(x_bf, w1x, preferred_element_type=jnp.float32)
        h = h + jnp.dot(s_bf, w1s, preferred_element_type=jnp.float32)
        h = jnp.maximum(h + b1, 0.0)                  # f32 epilogue (v5e: no bf16 VPU)
        # Second Linear: single fused matmul; output half starts at lane 128.
        y = jnp.dot(h.astype(jnp.bfloat16), w2,
                    preferred_element_type=jnp.float32) + b2
        out_ref[t] = y[:, sp:]                        # vreg-boundary slice, full-lane store
        return y[:, :sz]                              # new state, carried in vregs

    state = lax.fori_loop(0, tt, step, state_scr[...], unroll=True)
    state_scr[...] = state                            # carry to the next time chunk

    @pl.when(c == pl.num_programs(0) - 1)
    def _():
        sfin_ref[...] = state                         # single final-state write


def prepare_rnn_params(w1, b1, w2, b2, state_size, lane=LANE):
    """One-time conversion from PyTorch Linear (out,in) layout to kernel layout.

    Call once at parameter-init time, NOT per forward call.
    """
    h_dim = w1.shape[0]
    y_dim = w2.shape[0]
    out_dim = y_dim - state_size
    sp = -(-state_size // lane) * lane                # state half padded to lane boundary
    out_pad = -(-out_dim // lane) * lane

    w1t = jnp.transpose(w1)                                   # (2*SZ, H): rows = [state | x]
    w1s = w1t[:state_size].astype(jnp.bfloat16)               # (SZ, H) state half
    w1x = w1t[state_size:].astype(jnp.bfloat16)               # (SZ, H) input half
    b1r = b1.reshape(1, h_dim).astype(jnp.float32)

    # Fused second-layer weight: [w2_state | zeros | w2_out | zeros]  -> (H, SP+OUT_PAD)
    w2t = jnp.transpose(w2)                                   # (H, SZ+OUT)
    w2f = jnp.zeros((h_dim, sp + out_pad), jnp.bfloat16)
    w2f = w2f.at[:, :state_size].set(w2t[:, :state_size].astype(jnp.bfloat16))
    w2f = w2f.at[:, sp:sp + out_dim].set(w2t[:, state_size:].astype(jnp.bfloat16))
    b2f = jnp.zeros((1, sp + out_pad), jnp.float32)
    b2f = b2f.at[:, :state_size].set(b2[:state_size].astype(jnp.float32))
    b2f = b2f.at[:, sp:sp + out_dim].set(b2[state_size:].astype(jnp.float32))

    return dict(w1s=w1s, w1x=w1x, b1=b1r, w2=w2f, b2=b2f,
                state_size=state_size, hidden=h_dim,
                out_dim=out_dim, out_pad=out_pad, state_pad=sp)


def _pick_time_chunk(T, max_chunk=64):
    """Largest divisor of T that is <= max_chunk (inner loop is fully unrolled)."""
    tt = min(T, max_chunk)
    while T % tt:
        tt -= 1
    return tt


def rnn_unroll(state_initial, xs, params):
    """Runs T fused RNN steps.  xs: (T, B, SZ).  Returns (outs (T,B,OUT), final_state (B,SZ))."""
    T, B, d_in = xs.shape
    sz = params["state_size"]
    assert d_in == sz, "state.expand(ins[0].shape) requires last dim == state_size"
    h_dim = params["hidden"]
    out_dim, out_pad = params["out_dim"], params["out_pad"]
    sp = params["state_pad"]

    tt = _pick_time_chunk(T)
    n_chunks = T // tt

    s0 = state_initial.reshape(1, sz).astype(jnp.float32)
    xs_bf = xs.astype(jnp.bfloat16)

    grid_spec = pltpu.PrefetchScalarGridSpec(
        num_scalar_prefetch=0,
        grid=(n_chunks,),
        in_specs=[
            pl.BlockSpec((1, sz), lambda c: (0, 0)),                # s0       (resident)
            pl.BlockSpec((tt, B, sz), lambda c: (c, 0, 0)),         # x chunk  (streamed)
            pl.BlockSpec((sz, h_dim), lambda c: (0, 0)),            # w1s      (resident)
            pl.BlockSpec((sz, h_dim), lambda c: (0, 0)),            # w1x      (resident)
            pl.BlockSpec((1, h_dim), lambda c: (0, 0)),             # b1       (resident)
            pl.BlockSpec((h_dim, sp + out_pad), lambda c: (0, 0)),  # fused W2 (resident)
            pl.BlockSpec((1, sp + out_pad), lambda c: (0, 0)),      # fused b2 (resident)
        ],
        out_specs=(
            pl.BlockSpec((tt, B, out_pad), lambda c: (c, 0, 0)),    # per-chunk outputs
            pl.BlockSpec((B, sz), lambda c: (0, 0)),                # final state (resident)
        ),
        scratch_shapes=[pltpu.VMEM((B, sz), jnp.float32)],          # carried state
    )

    outs_pad, final_state = pl.pallas_call(
        _rnn_chunk_kernel,
        out_shape=(jax.ShapeDtypeStruct((T, B, out_pad), jnp.float32),
                   jax.ShapeDtypeStruct((B, sz), jnp.float32)),
        grid_spec=grid_spec,
        compiler_params=pltpu.CompilerParams(
            dimension_semantics=("arbitrary",)),   # sequential recurrence over time chunks
    )(s0, xs_bf, params["w1s"], params["w1x"], params["b1"],
      params["w2"], params["b2"])

    return outs_pad[..., :out_dim], final_state


if __name__ == "__main__":
    # Small, TPU-friendly sizes.
    T = 8          # sequence length (fused timesteps)
    B = 8          # batch
    SZ = 32        # state_size (== input feature dim, required by .expand)
    H = 64         # hidden width of fn's first Linear
    OUT = 32       # output feature dim; fn's last Linear has SZ+OUT outputs

    key = jax.random.PRNGKey(0)
    k_state, k_x, k_w1, k_b1, k_w2, k_b2 = jax.random.split(key, 6)

    # State((SZ,)): scale = 1.0 for 1-D shape -> plain randn.
    state_initial = jax.random.normal(k_state, (SZ,), dtype=jnp.float32)
    xs = jax.random.normal(k_x, (T, B, SZ), dtype=jnp.float32)

    # fn = Sequential(Linear(2*SZ, H), ReLU, Linear(H, SZ+OUT)); PyTorch (out,in) layout.
    w1 = jax.random.normal(k_w1, (H, 2 * SZ), dtype=jnp.float32) * (2 * SZ) ** -0.5
    b1 = jax.random.normal(k_b1, (H,), dtype=jnp.float32) * 0.01
    w2 = jax.random.normal(k_w2, (SZ + OUT, H), dtype=jnp.float32) * H ** -0.5
    b2 = jax.random.normal(k_b2, (SZ + OUT,), dtype=jnp.float32) * 0.01

    # One-time layout / precision prep (NOT per step).
    params = prepare_rnn_params(w1, b1, w2, b2, SZ)

    outs, final_state = rnn_unroll(state_initial, xs, params)
    outs = jax.block_until_ready(outs)
    final_state = jax.block_until_ready(final_state)
    assert outs.shape == (T, B, OUT) and final_state.shape == (B, SZ)

    # Pure-JAX reference using the same bf16 operand / f32 accumulate precision
    # as the kernel.  Matches PyTorch semantics up to the bf16 cast.
    w2t_bf = jnp.transpose(w2).astype(jnp.bfloat16)           # (H, SZ+OUT)
    state = jnp.broadcast_to(state_initial[None, :], (B, SZ)).astype(jnp.float32)
    ref_outs = []
    for t in range(T):
        x_bf = xs[t].astype(jnp.bfloat16)
        s_bf = state.astype(jnp.bfloat16)
        h = jnp.dot(x_bf, params["w1x"], preferred_element_type=jnp.float32)
        h = h + jnp.dot(s_bf, params["w1s"], preferred_element_type=jnp.float32)
        h = jnp.maximum(h + b1[None, :], 0.0)
        y = jnp.dot(h.astype(jnp.bfloat16), w2t_bf,
                    preferred_element_type=jnp.float32) + b2[None, :]
        state = y[:, :SZ]
        ref_outs.append(y[:, SZ:])
    ref_outs = jnp.stack(ref_outs)

    assert np.allclose(np.asarray(outs), np.asarray(ref_outs), atol=2e-3, rtol=2e-3)
    assert np.allclose(np.asarray(final_state), np.asarray(state), atol=2e-3, rtol=2e-3)

    print("KERNEL_OK")
</pallas_src>

<mosaic_0001>
module attributes {stable_mosaic.version = 11 : i64} {
  func.func @_rnn_chunk_kernel(%arg0: i32, %arg1: memref<1x32xf32, #tpu.memory_space<vmem>>, %arg2: memref<8x8x32xbf16, #tpu.memory_space<vmem>>, %arg3: memref<32x64xbf16, #tpu.memory_space<vmem>>, %arg4: memref<32x64xbf16, #tpu.memory_space<vmem>>, %arg5: memref<1x64xf32, #tpu.memory_space<vmem>>, %arg6: memref<64x256xbf16, #tpu.memory_space<vmem>>, %arg7: memref<1x256xf32, #tpu.memory_space<vmem>>, %arg8: memref<8x8x128xf32, #tpu.memory_space<vmem>>, %arg9: memref<8x32xf32, #tpu.memory_space<vmem>>, %arg10: memref<8x32xf32, #tpu.memory_space<vmem>>) attributes {dimension_semantics = [#tpu.dimension_semantics<arbitrary>], iteration_bounds = array<i64: 1>, scalar_prefetch = 0 : i64, scratch_operands = 1 : i64, tpu.core_type = #tpu.core_type<tc>, window_params = [{pipeline_mode = #tpu.pipeline_mode<synchronous>, transform_indices = @transform_0, window_bounds = array<i64: 1, 32>}, {transform_indices = @transform_1, window_bounds = array<i64: 8, 8, 32>}, {pipeline_mode = #tpu.pipeline_mode<synchronous>, transform_indices = @transform_2, window_bounds = array<i64: 32, 64>}, {pipeline_mode = #tpu.pipeline_mode<synchronous>, transform_indices = @transform_3, window_bounds = array<i64: 32, 64>}, {pipeline_mode = #tpu.pipeline_mode<synchronous>, transform_indices = @transform_4, window_bounds = array<i64: 1, 64>}, {pipeline_mode = #tpu.pipeline_mode<synchronous>, transform_indices = @transform_5, window_bounds = array<i64: 64, 256>}, {pipeline_mode = #tpu.pipeline_mode<synchronous>, transform_indices = @transform_6, window_bounds = array<i64: 1, 256>}, {transform_indices = @transform_7, window_bounds = array<i64: 8, 8, 128>}, {pipeline_mode = #tpu.pipeline_mode<synchronous>, transform_indices = @transform_8, window_bounds = array<i64: 8, 32>}]} {
    %c0_i32 = arith.constant 0 : i32
    %0 = arith.cmpi eq, %arg0, %c0_i32 : i32
    %1 = arith.extui %0 : i1 to i32
    %c0_i32_0 = arith.constant 0 : i32
    %2 = arith.cmpi ne, %1, %c0_i32_0 : i32
    scf.if %2 {
      %c0_80 = arith.constant 0 : index
      %c0_81 = arith.constant 0 : index
      %169 = vector.load %arg1[%c0_80, %c0_81] : memref<1x32xf32, #tpu.memory_space<vmem>>, vector<1x32xf32>
      %170 = vector.shape_cast %169 : vector<1x32xf32> to vector<1x32xf32>
      %171 = vector.broadcast %170 : vector<1x32xf32> to vector<8x32xf32>
      %c0_82 = arith.constant 0 : index
      %c0_83 = arith.constant 0 : index
      %172 = vector.load %arg10[%c0_82, %c0_83] : memref<8x32xf32, #tpu.memory_space<vmem>>, vector<8x32xf32>
      tpu.vector_store %arg10[%c0_82, %c0_83], %171 {strides = array<i32>} : memref<8x32xf32, #tpu.memory_space<vmem>>, vector<8x32xf32>,
    } else {
    }
    %c0 = arith.constant 0 : index
    %c0_1 = arith.constant 0 : index
    %3 = vector.load %arg3[%c0, %c0_1] : memref<32x64xbf16, #tpu.memory_space<vmem>>, vector<32x64xbf16>
    %c0_2 = arith.constant 0 : index
    %c0_3 = arith.constant 0 : index
    %4 = vector.load %arg4[%c0_2, %c0_3] : memref<32x64xbf16, #tpu.memory_space<vmem>>, vector<32x64xbf16>
    %c0_4 = arith.constant 0 : index
    %c0_5 = arith.constant 0 : index
    %5 = vector.load %arg6[%c0_4, %c0_5] : memref<64x256xbf16, #tpu.memory_space<vmem>>, vector<64x256xbf16>
    %c0_6 = arith.constant 0 : index
    %c0_7 = arith.constant 0 : index
    %6 = vector.load %arg5[%c0_6, %c0_7] : memref<1x64xf32, #tpu.memory_space<vmem>>, vector<1x64xf32>
    %7 = vector.shape_cast %6 : vector<1x64xf32> to vector<1x64xf32>
    %8 = vector.broadcast %7 : vector<1x64xf32> to vector<8x64xf32>
    %c0_8 = arith.constant 0 : index
    %c0_9 = arith.constant 0 : index
    %9 = vector.load %arg7[%c0_8, %c0_9] : memref<1x256xf32, #tpu.memory_space<vmem>>, vector<1x256xf32>
    %10 = vector.shape_cast %9 : vector<1x256xf32> to vector<1x256xf32>
    %11 = vector.broadcast %10 : vector<1x256xf32> to vector<8x256xf32>
    %c0_10 = arith.constant 0 : index
    %c0_11 = arith.constant 0 : index
    %12 = vector.load %arg10[%c0_10, %c0_11] : memref<8x32xf32, #tpu.memory_space<vmem>>, vector<8x32xf32>
    %c0_i32_12 = arith.constant 0 : i32
    %13 = arith.index_cast %c0_i32_12 : i32 to index
    %c0_13 = arith.constant 0 : index
    %c0_14 = arith.constant 0 : index
    %14 = vector.load %arg2[%13, %c0_13, %c0_14] : memref<8x8x32xbf16, #tpu.memory_space<vmem>>, vector<1x8x32xbf16>
    %15 = vector.shape_cast %14 : vector<1x8x32xbf16> to vector<8x32xbf16>
    %16 = arith.truncf %12 : vector<8x32xf32> to vector<8x32xbf16>
    %cst = arith.constant dense<0.000000e+00> : vector<8x64xf32>
    %17 = tpu.matmul %15, %4, %cst {dimension_numbers = #tpu.dot_dimension_numbers<[1], [0], [0], [1], [0, 0, 1, 1], [], []>} : vector<8x32xbf16>, vector<32x64xbf16>, vector<8x64xf32> -> vector<8x64xf32>
    %cst_15 = arith.constant dense<0.000000e+00> : vector<8x64xf32>
    %18 = tpu.matmul %16, %3, %cst_15 {dimension_numbers = #tpu.dot_dimension_numbers<[1], [0], [0], [1], [0, 0, 1, 1], [], []>} : vector<8x32xbf16>, vector<32x64xbf16>, vector<8x64xf32> -> vector<8x64xf32>
    %19 = arith.addf %17, %18 : vector<8x64xf32>
    %20 = arith.addf %19, %8 : vector<8x64xf32>
    %cst_16 = arith.constant 0.000000e+00 : f32
    %21 = vector.broadcast %cst_16 : f32 to vector<8x64xf32>
    %22 = arith.maximumf %20, %21 : vector<8x64xf32>
    %23 = arith.truncf %22 : vector<8x64xf32> to vector<8x64xbf16>
    %cst_17 = arith.constant dense<0.000000e+00> : vector<8x256xf32>
    %24 = tpu.matmul %23, %5, %cst_17 {dimension_numbers = #tpu.dot_dimension_numbers<[1], [0], [0], [1], [0, 0, 1, 1], [], []>} : vector<8x64xbf16>, vector<64x256xbf16>, vector<8x256xf32> -> vector<8x256xf32>
    %25 = arith.addf %24, %11 : vector<8x256xf32>
    %26 = vector.extract_strided_slice %25 {offsets = [0, 128], sizes = [8, 128], strides = [1, 1]} : vector<8x256xf32> to vector<8x128xf32>
    %27 = arith.index_cast %c0_i32_12 : i32 to index
    %c0_18 = arith.constant 0 : index
    %c0_19 = arith.constant 0 : index
    %28 = vector.load %arg8[%27, %c0_18, %c0_19] : memref<8x8x128xf32, #tpu.memory_space<vmem>>, vector<1x8x128xf32>
    %29 = vector.shape_cast %28 : vector<1x8x128xf32> to vector<8x128xf32>
    %30 = vector.shape_cast %26 : vector<8x128xf32> to vector<1x8x128xf32>
    tpu.vector_store %arg8[%27, %c0_18, %c0_19], %30 {strides = array<i32>} : memref<8x8x128xf32, #tpu.memory_space<vmem>>, vector<1x8x128xf32>,
    %31 = vector.extract_strided_slice %25 {offsets = [0, 0], sizes = [8, 32], strides = [1, 1]} : vector<8x256xf32> to vector<8x32xf32>
    %c1_i32 = arith.constant 1 : i32
    %32 = arith.index_cast %c1_i32 : i32 to index
    %c0_20 = arith.constant 0 : index
    %c0_21 = arith.constant 0 : index
    %33 = vector.load %arg2[%32, %c0_20, %c0_21] : memref<8x8x32xbf16, #tpu.memory_space<vmem>>, vector<1x8x32xbf16>
    %34 = vector.shape_cast %33 : vector<1x8x32xbf16> to vector<8x32xbf16>
    %35 = arith.truncf %31 : vector<8x32xf32> to vector<8x32xbf16>
    %cst_22 = arith.constant dense<0.000000e+00> : vector<8x64xf32>
    %36 = tpu.matmul %34, %4, %cst_22 {dimension_numbers = #tpu.dot_dimension_numbers<[1], [0], [0], [1], [0, 0, 1, 1], [], []>} : vector<8x32xbf16>, vector<32x64xbf16>, vector<8x64xf32> -> vector<8x64xf32>
    %cst_23 = arith.constant dense<0.000000e+00> : vector<8x64xf32>
    %37 = tpu.matmul %35, %3, %cst_23 {dimension_numbers = #tpu.dot_dimension_numbers<[1], [0], [0], [1], [0, 0, 1, 1], [], []>} : vector<8x32xbf16>, vector<32x64xbf16>, vector<8x64xf32> -> vector<8x64xf32>
    %38 = arith.addf %36, %37 : vector<8x64xf32>
    %39 = arith.addf %38, %8 : vector<8x64xf32>
    %cst_24 = arith.constant 0.000000e+00 : f32
    %40 = vector.broadcast %cst_24 : f32 to vector<8x64xf32>
    %41 = arith.maximumf %39, %40 : vector<8x64xf32>
    %42 = arith.truncf %41 : vector<8x64xf32> to vector<8x64xbf16>
    %cst_25 = arith.constant dense<0.000000e+00> : vector<8x256xf32>
    %43 = tpu.matmul %42, %5, %cst_25 {dimension_numbers = #tpu.dot_dimension_numbers<[1], [0], [0], [1], [0, 0, 1, 1], [], []>} : vector<8x64xbf16>, vector<64x256xbf16>, vector<8x256xf32> -> vector<8x256xf32>
    %44 = arith.addf %43, %11 : vector<8x256xf32>
    %45 = vector.extract_strided_slice %44 {offsets = [0, 128], sizes = [8, 128], strides = [1, 1]} : vector<8x256xf32> to vector<8x128xf32>
    %46 = arith.index_cast %c1_i32 : i32 to index
    %c0_26 = arith.constant 0 : index
    %c0_27 = arith.constant 0 : index
    %47 = vector.load %arg8[%46, %c0_26, %c0_27] : memref<8x8x128xf32, #tpu.memory_space<vmem>>, vector<1x8x128xf32>
    %48 = vector.shape_cast %47 : vector<1x8x128xf32> to vector<8x128xf32>
    %49 = vector.shape_cast %45 : vector<8x128xf32> to vector<1x8x128xf32>
    tpu.vector_store %arg8[%46, %c0_26, %c0_27], %49 {strides = array<i32>} : memref<8x8x128xf32, #tpu.memory_space<vmem>>, vector<1x8x128xf32>,
    %50 = vector.extract_strided_slice %44 {offsets = [0, 0], sizes = [8, 32], strides = [1, 1]} : vector<8x256xf32> to vector<8x32xf32>
    %c2_i32 = arith.constant 2 : i32
    %51 = arith.index_cast %c2_i32 : i32 to index
    %c0_28 = arith.constant 0 : index
    %c0_29 = arith.constant 0 : index
    %52 = vector.load %arg2[%51, %c0_28, %c0_29] : memref<8x8x32xbf16, #tpu.memory_space<vmem>>, vector<1x8x32xbf16>
    %53 = vector.shape_cast %52 : vector<1x8x32xbf16> to vector<8x32xbf16>
    %54 = arith.truncf %50 : vector<8x32xf32> to vector<8x32xbf16>
    %cst_30 = arith.constant dense<0.000000e+00> : vector<8x64xf32>
    %55 = tpu.matmul %53, %4, %cst_30 {dimension_numbers = #tpu.dot_dimension_numbers<[1], [0], [0], [1], [0, 0, 1, 1], [], []>} : vector<8x32xbf16>, vector<32x64xbf16>, vector<8x64xf32> -> vector<8x64xf32>
    %cst_31 = arith.constant dense<0.000000e+00> : vector<8x64xf32>
    %56 = tpu.matmul %54, %3, %cst_31 {dimension_numbers = #tpu.dot_dimension_numbers<[1], [0], [0], [1], [0, 0, 1, 1], [], []>} : vector<8x32xbf16>, vector<32x64xbf16>, vector<8x64xf32> -> vector<8x64xf32>
    %57 = arith.addf %55, %56 : vector<8x64xf32>
    %58 = arith.addf %57, %8 : vector<8x64xf32>
    %cst_32 = arith.constant 0.000000e+00 : f32
    %59 = vector.broadcast %cst_32 : f32 to vector<8x64xf32>
    %60 = arith.maximumf %58, %59 : vector<8x64xf32>
    %61 = arith.truncf %60 : vector<8x64xf32> to vector<8x64xbf16>
    %cst_33 = arith.constant dense<0.000000e+00> : vector<8x256xf32>
    %62 = tpu.matmul %61, %5, %cst_33 {dimension_numbers = #tpu.dot_dimension_numbers<[1], [0], [0], [1], [0, 0, 1, 1], [], []>} : vector<8x64xbf16>, vector<64x256xbf16>, vector<8x256xf32> -> vector<8x256xf32>
    %63 = arith.addf %62, %11 : vector<8x256xf32>
    %64 = vector.extract_strided_slice %63 {offsets = [0, 128], sizes = [8, 128], strides = [1, 1]} : vector<8x256xf32> to vector<8x128xf32>
    %65 = arith.index_cast %c2_i32 : i32 to index
    %c0_34 = arith.constant 0 : index
    %c0_35 = arith.constant 0 : index
    %66 = vector.load %arg8[%65, %c0_34, %c0_35] : memref<8x8x128xf32, #tpu.memory_space<vmem>>, vector<1x8x128xf32>
    %67 = vector.shape_cast %66 : vector<1x8x128xf32> to vector<8x128xf32>
    %68 = vector.shape_cast %64 : vector<8x128xf32> to vector<1x8x128xf32>
    tpu.vector_store %arg8[%65, %c0_34, %c0_35], %68 {strides = array<i32>} : memref<8x8x128xf32, #tpu.memory_space<vmem>>, vector<1x8x128xf32>,
    %69 = vector.extract_strided_slice %63 {offsets = [0, 0], sizes = [8, 32], strides = [1, 1]} : vector<8x256xf32> to vector<8x32xf32>
    %c3_i32 = arith.constant 3 : i32
    %70 = arith.index_cast %c3_i32 : i32 to index
    %c0_36 = arith.constant 0 : index
    %c0_37 = arith.constant 0 : index
    %71 = vector.load %arg2[%70, %c0_36, %c0_37] : memref<8x8x32xbf16, #tpu.memory_space<vmem>>, vector<1x8x32xbf16>
    %72 = vector.shape_cast %71 : vector<1x8x32xbf16> to vector<8x32xbf16>
    %73 = arith.truncf %69 : vector<8x32xf32> to vector<8x32xbf16>
    %cst_38 = arith.constant dense<0.000000e+00> : vector<8x64xf32>
    %74 = tpu.matmul %72, %4, %cst_38 {dimension_numbers = #tpu.dot_dimension_numbers<[1], [0], [0], [1], [0, 0, 1, 1], [], []>} : vector<8x32xbf16>, vector<32x64xbf16>, vector<8x64xf32> -> vector<8x64xf32>
    %cst_39 = arith.constant dense<0.000000e+00> : vector<8x64xf32>
    %75 = tpu.matmul %73, %3, %cst_39 {dimension_numbers = #tpu.dot_dimension_numbers<[1], [0], [0], [1], [0, 0, 1, 1], [], []>} : vector<8x32xbf16>, vector<32x64xbf16>, vector<8x64xf32> -> vector<8x64xf32>
    %76 = arith.addf %74, %75 : vector<8x64xf32>
    %77 = arith.addf %76, %8 : vector<8x64xf32>
    %cst_40 = arith.constant 0.000000e+00 : f32
    %78 = vector.broadcast %cst_40 : f32 to vector<8x64xf32>
    %79 = arith.maximumf %77, %78 : vector<8x64xf32>
    %80 = arith.truncf %79 : vector<8x64xf32> to vector<8x64xbf16>
    %cst_41 = arith.constant dense<0.000000e+00> : vector<8x256xf32>
    %81 = tpu.matmul %80, %5, %cst_41 {dimension_numbers = #tpu.dot_dimension_numbers<[1], [0], [0], [1], [0, 0, 1, 1], [], []>} : vector<8x64xbf16>, vector<64x256xbf16>, vector<8x256xf32> -> vector<8x256xf32>
    %82 = arith.addf %81, %11 : vector<8x256xf32>
    %83 = vector.extract_strided_slice %82 {offsets = [0, 128], sizes = [8, 128], strides = [1, 1]} : vector<8x256xf32> to vector<8x128xf32>
    %84 = arith.index_cast %c3_i32 : i32 to index
    %c0_42 = arith.constant 0 : index
    %c0_43 = arith.constant 0 : index
    %85 = vector.load %arg8[%84, %c0_42, %c0_43] : memref<8x8x128xf32, #tpu.memory_space<vmem>>, vector<1x8x128xf32>
    %86 = vector.shape_cast %85 : vector<1x8x128xf32> to vector<8x128xf32>
    %87 = vector.shape_cast %83 : vector<8x128xf32> to vector<1x8x128xf32>
    tpu.vector_store %arg8[%84, %c0_42, %c0_43], %87 {strides = array<i32>} : memref<8x8x128xf32, #tpu.memory_space<vmem>>, vector<1x8x128xf32>,
    %88 = vector.extract_strided_slice %82 {offsets = [0, 0], sizes = [8, 32], strides = [1, 1]} : vector<8x256xf32> to vector<8x32xf32>
    %c4_i32 = arith.constant 4 : i32
    %89 = arith.index_cast %c4_i32 : i32 to index
    %c0_44 = arith.constant 0 : index
    %c0_45 = arith.constant 0 : index
    %90 = vector.load %arg2[%89, %c0_44, %c0_45] : memref<8x8x32xbf16, #tpu.memory_space<vmem>>, vector<1x8x32xbf16>
    %91 = vector.shape_cast %90 : vector<1x8x32xbf16> to vector<8x32xbf16>
    %92 = arith.truncf %88 : vector<8x32xf32> to vector<8x32xbf16>
    %cst_46 = arith.constant dense<0.000000e+00> : vector<8x64xf32>
    %93 = tpu.matmul %91, %4, %cst_46 {dimension_numbers = #tpu.dot_dimension_numbers<[1], [0], [0], [1], [0, 0, 1, 1], [], []>} : vector<8x32xbf16>, vector<32x64xbf16>, vector<8x64xf32> -> vector<8x64xf32>
    %cst_47 = arith.constant dense<0.000000e+00> : vector<8x64xf32>
    %94 = tpu.matmul %92, %3, %cst_47 {dimension_numbers = #tpu.dot_dimension_numbers<[1], [0], [0], [1], [0, 0, 1, 1], [], []>} : vector<8x32xbf16>, vector<32x64xbf16>, vector<8x64xf32> -> vector<8x64xf32>
    %95 = arith.addf %93, %94 : vector<8x64xf32>
    %96 = arith.addf %95, %8 : vector<8x64xf32>
    %cst_48 = arith.constant 0.000000e+00 : f32
    %97 = vector.broadcast %cst_48 : f32 to vector<8x64xf32>
    %98 = arith.maximumf %96, %97 : vector<8x64xf32>
    %99 = arith.truncf %98 : vector<8x64xf32> to vector<8x64xbf16>
    %cst_49 = arith.constant dense<0.000000e+00> : vector<8x256xf32>
    %100 = tpu.matmul %99, %5, %cst_49 {dimension_numbers = #tpu.dot_dimension_numbers<[1], [0], [0], [1], [0, 0, 1, 1], [], []>} : vector<8x64xbf16>, vector<64x256xbf16>, vector<8x256xf32> -> vector<8x256xf32>
    %101 = arith.addf %100, %11 : vector<8x256xf32>
    %102 = vector.extract_strided_slice %101 {offsets = [0, 128], sizes = [8, 128], strides = [1, 1]} : vector<8x256xf32> to vector<8x128xf32>
    %103 = arith.index_cast %c4_i32 : i32 to index
    %c0_50 = arith.constant 0 : index
    %c0_51 = arith.constant 0 : index
    %104 = vector.load %arg8[%103, %c0_50, %c0_51] : memref<8x8x128xf32, #tpu.memory_space<vmem>>, vector<1x8x128xf32>
    %105 = vector.shape_cast %104 : vector<1x8x128xf32> to vector<8x128xf32>
    %106 = vector.shape_cast %102 : vector<8x128xf32> to vector<1x8x128xf32>
    tpu.vector_store %arg8[%103, %c0_50, %c0_51], %106 {strides = array<i32>} : memref<8x8x128xf32, #tpu.memory_space<vmem>>, vector<1x8x128xf32>,
    %107 = vector.extract_strided_slice %101 {offsets = [0, 0], sizes = [8, 32], strides = [1, 1]} : vector<8x256xf32> to vector<8x32xf32>
    %c5_i32 = arith.constant 5 : i32
    %108 = arith.index_cast %c5_i32 : i32 to index
    %c0_52 = arith.constant 0 : index
    %c0_53 = arith.constant 0 : index
    %109 = vector.load %arg2[%108, %c0_52, %c0_53] : memref<8x8x32xbf16, #tpu.memory_space<vmem>>, vector<1x8x32xbf16>
    %110 = vector.shape_cast %109 : vector<1x8x32xbf16> to vector<8x32xbf16>
    %111 = arith.truncf %107 : vector<8x32xf32> to vector<8x32xbf16>
    %cst_54 = arith.constant dense<0.000000e+00> : vector<8x64xf32>
    %112 = tpu.matmul %110, %4, %cst_54 {dimension_numbers = #tpu.dot_dimension_numbers<[1], [0], [0], [1], [0, 0, 1, 1], [], []>} : vector<8x32xbf16>, vector<32x64xbf16>, vector<8x64xf32> -> vector<8x64xf32>
    %cst_55 = arith.constant dense<0.000000e+00> : vector<8x64xf32>
    %113 = tpu.matmul %111, %3, %cst_55 {dimension_numbers = #tpu.dot_dimension_numbers<[1], [0], [0], [1], [0, 0, 1, 1], [], []>} : vector<8x32xbf16>, vector<32x64xbf16>, vector<8x64xf32> -> vector<8x64xf32>
    %114 = arith.addf %112, %113 : vector<8x64xf32>
    %115 = arith.addf %114, %8 : vector<8x64xf32>
    %cst_56 = arith.constant 0.000000e+00 : f32
    %116 = vector.broadcast %cst_56 : f32 to vector<8x64xf32>
    %117 = arith.maximumf %115, %116 : vector<8x64xf32>
    %118 = arith.truncf %117 : vector<8x64xf32> to vector<8x64xbf16>
    %cst_57 = arith.constant dense<0.000000e+00> : vector<8x256xf32>
    %119 = tpu.matmul %118, %5, %cst_57 {dimension_numbers = #tpu.dot_dimension_numbers<[1], [0], [0], [1], [0, 0, 1, 1], [], []>} : vector<8x64xbf16>, vector<64x256xbf16>, vector<8x256xf32> -> vector<8x256xf32>
    %120 = arith.addf %119, %11 : vector<8x256xf32>
    %121 = vector.extract_strided_slice %120 {offsets = [0, 128], sizes = [8, 128], strides = [1, 1]} : vector<8x256xf32> to vector<8x128xf32>
    %122 = arith.index_cast %c5_i32 : i32 to index
    %c0_58 = arith.constant 0 : index
    %c0_59 = arith.constant 0 : index
    %123 = vector.load %arg8[%122, %c0_58, %c0_59] : memref<8x8x128xf32, #tpu.memory_space<vmem>>, vector<1x8x128xf32>
    %124 = vector.shape_cast %123 : vector<1x8x128xf32> to vector<8x128xf32>
    %125 = vector.shape_cast %121 : vector<8x128xf32> to vector<1x8x128xf32>
    tpu.vector_store %arg8[%122, %c0_58, %c0_59], %125 {strides = array<i32>} : memref<8x8x128xf32, #tpu.memory_space<vmem>>, vector<1x8x128xf32>,
    %126 = vector.extract_strided_slice %120 {offsets = [0, 0], sizes = [8, 32], strides = [1, 1]} : vector<8x256xf32> to vector<8x32xf32>
    %c6_i32 = arith.constant 6 : i32
    %127 = arith.index_cast %c6_i32 : i32 to index
    %c0_60 = arith.constant 0 : index
    %c0_61 = arith.constant 0 : index
    %128 = vector.load %arg2[%127, %c0_60, %c0_61] : memref<8x8x32xbf16, #tpu.memory_space<vmem>>, vector<1x8x32xbf16>
    %129 = vector.shape_cast %128 : vector<1x8x32xbf16> to vector<8x32xbf16>
    %130 = arith.truncf %126 : vector<8x32xf32> to vector<8x32xbf16>
    %cst_62 = arith.constant dense<0.000000e+00> : vector<8x64xf32>
    %131 = tpu.matmul %129, %4, %cst_62 {dimension_numbers = #tpu.dot_dimension_numbers<[1], [0], [0], [1], [0, 0, 1, 1], [], []>} : vector<8x32xbf16>, vector<32x64xbf16>, vector<8x64xf32> -> vector<8x64xf32>
    %cst_63 = arith.constant dense<0.000000e+00> : vector<8x64xf32>
    %132 = tpu.matmul %130, %3, %cst_63 {dimension_numbers = #tpu.dot_dimension_numbers<[1], [0], [0], [1], [0, 0, 1, 1], [], []>} : vector<8x32xbf16>, vector<32x64xbf16>, vector<8x64xf32> -> vector<8x64xf32>
    %133 = arith.addf %131, %132 : vector<8x64xf32>
    %134 = arith.addf %133, %8 : vector<8x64xf32>
    %cst_64 = arith.constant 0.000000e+00 : f32
    %135 = vector.broadcast %cst_64 : f32 to vector<8x64xf32>
    %136 = arith.maximumf %134, %135 : vector<8x64xf32>
    %137 = arith.truncf %136 : vector<8x64xf32> to vector<8x64xbf16>
    %cst_65 = arith.constant dense<0.000000e+00> : vector<8x256xf32>
    %138 = tpu.matmul %137, %5, %cst_65 {dimension_numbers = #tpu.dot_dimension_numbers<[1], [0], [0], [1], [0, 0, 1, 1], [], []>} : vector<8x64xbf16>, vector<64x256xbf16>, vector<8x256xf32> -> vector<8x256xf32>
    %139 = arith.addf %138, %11 : vector<8x256xf32>
    %140 = vector.extract_strided_slice %139 {offsets = [0, 128], sizes = [8, 128], strides = [1, 1]} : vector<8x256xf32> to vector<8x128xf32>
    %141 = arith.index_cast %c6_i32 : i32 to index
    %c0_66 = arith.constant 0 : index
    %c0_67 = arith.constant 0 : index
    %142 = vector.load %arg8[%141, %c0_66, %c0_67] : memref<8x8x128xf32, #tpu.memory_space<vmem>>, vector<1x8x128xf32>
    %143 = vector.shape_cast %142 : vector<1x8x128xf32> to vector<8x128xf32>
    %144 = vector.shape_cast %140 : vector<8x128xf32> to vector<1x8x128xf32>
    tpu.vector_store %arg8[%141, %c0_66, %c0_67], %144 {strides = array<i32>} : memref<8x8x128xf32, #tpu.memory_space<vmem>>, vector<1x8x128xf32>,
    %145 = vector.extract_strided_slice %139 {offsets = [0, 0], sizes = [8, 32], strides = [1, 1]} : vector<8x256xf32> to vector<8x32xf32>
    %c7_i32 = arith.constant 7 : i32
    %146 = arith.index_cast %c7_i32 : i32 to index
    %c0_68 = arith.constant 0 : index
    %c0_69 = arith.constant 0 : index
    %147 = vector.load %arg2[%146, %c0_68, %c0_69] : memref<8x8x32xbf16, #tpu.memory_space<vmem>>, vector<1x8x32xbf16>
    %148 = vector.shape_cast %147 : vector<1x8x32xbf16> to vector<8x32xbf16>
    %149 = arith.truncf %145 : vector<8x32xf32> to vector<8x32xbf16>
    %cst_70 = arith.constant dense<0.000000e+00> : vector<8x64xf32>
    %150 = tpu.matmul %148, %4, %cst_70 {dimension_numbers = #tpu.dot_dimension_numbers<[1], [0], [0], [1], [0, 0, 1, 1], [], []>} : vector<8x32xbf16>, vector<32x64xbf16>, vector<8x64xf32> -> vector<8x64xf32>
    %cst_71 = arith.constant dense<0.000000e+00> : vector<8x64xf32>
    %151 = tpu.matmul %149, %3, %cst_71 {dimension_numbers = #tpu.dot_dimension_numbers<[1], [0], [0], [1], [0, 0, 1, 1], [], []>} : vector<8x32xbf16>, vector<32x64xbf16>, vector<8x64xf32> -> vector<8x64xf32>
    %152 = arith.addf %150, %151 : vector<8x64xf32>
    %153 = arith.addf %152, %8 : vector<8x64xf32>
    %cst_72 = arith.constant 0.000000e+00 : f32
    %154 = vector.broadcast %cst_72 : f32 to vector<8x64xf32>
    %155 = arith.maximumf %153, %154 : vector<8x64xf32>
    %156 = arith.truncf %155 : vector<8x64xf32> to vector<8x64xbf16>
    %cst_73 = arith.constant dense<0.000000e+00> : vector<8x256xf32>
    %157 = tpu.matmul %156, %5, %cst_73 {dimension_numbers = #tpu.dot_dimension_numbers<[1], [0], [0], [1], [0, 0, 1, 1], [], []>} : vector<8x64xbf16>, vector<64x256xbf16>, vector<8x256xf32> -> vector<8x256xf32>
    %158 = arith.addf %157, %11 : vector<8x256xf32>
    %159 = vector.extract_strided_slice %158 {offsets = [0, 128], sizes = [8, 128], strides = [1, 1]} : vector<8x256xf32> to vector<8x128xf32>
    %160 = arith.index_cast %c7_i32 : i32 to index
    %c0_74 = arith.constant 0 : index
    %c0_75 = arith.constant 0 : index
    %161 = vector.load %arg8[%160, %c0_74, %c0_75] : memref<8x8x128xf32, #tpu.memory_space<vmem>>, vector<1x8x128xf32>
    %162 = vector.shape_cast %161 : vector<1x8x128xf32> to vector<8x128xf32>
    %163 = vector.shape_cast %159 : vector<8x128xf32> to vector<1x8x128xf32>
    tpu.vector_store %arg8[%160, %c0_74, %c0_75], %163 {strides = array<i32>} : memref<8x8x128xf32, #tpu.memory_space<vmem>>, vector<1x8x128xf32>,
    %164 = vector.extract_strided_slice %158 {offsets = [0, 0], sizes = [8, 32], strides = [1, 1]} : vector<8x256xf32> to vector<8x32xf32>
    %c8_i32 = arith.constant 8 : i32
    %c0_76 = arith.constant 0 : index
    %c0_77 = arith.constant 0 : index
    %165 = vector.load %arg10[%c0_76, %c0_77] : memref<8x32xf32, #tpu.memory_space<vmem>>, vector<8x32xf32>
    tpu.vector_store %arg10[%c0_76, %c0_77], %164 {strides = array<i32>} : memref<8x32xf32, #tpu.memory_space<vmem>>, vector<8x32xf32>,
    %c0_i32_78 = arith.constant 0 : i32
    %166 = arith.cmpi eq, %arg0, %c0_i32_78 : i32
    %167 = arith.extui %166 : i1 to i32
    %c0_i32_79 = arith.constant 0 : i32
    %168 = arith.cmpi ne, %167, %c0_i32_79 : i32
    scf.if %168 {
      %c0_80 = arith.constant 0 : index
      %c0_81 = arith.constant 0 : index
      %169 = vector.load %arg9[%c0_80, %c0_81] : memref<8x32xf32, #tpu.memory_space<vmem>>, vector<8x32xf32>
      tpu.vector_store %arg9[%c0_80, %c0_81], %164 {strides = array<i32>} : memref<8x32xf32, #tpu.memory_space<vmem>>, vector<8x32xf32>,
    } else {
    }
    return
  }
  func.func @transform_0(%arg0: i32) -> (i32, i32) {
    %c0_i32 = arith.constant 0 : i32
    %c0_i32_0 = arith.constant 0 : i32
    %c0_i32_1 = arith.constant 0 : i32
    return %c0_i32, %c0_i32_0 : i32, i32
  }
  func.func @transform_1(%arg0: i32) -> (i32, i32, i32) {
    %c0_i32 = arith.constant 0 : i32
    %c0_i32_0 = arith.constant 0 : i32
    %c0_i32_1 = arith.constant 0 : i32
    return %arg0, %c0_i32, %c0_i32_0 : i32, i32, i32
  }
  func.func @transform_2(%arg0: i32) -> (i32, i32) {
    %c0_i32 = arith.constant 0 : i32
    %c0_i32_0 = arith.constant 0 : i32
    %c0_i32_1 = arith.constant 0 : i32
    return %c0_i32, %c0_i32_0 : i32, i32
  }
  func.func @transform_3(%arg0: i32) -> (i32, i32) {
    %c0_i32 = arith.constant 0 : i32
    %c0_i32_0 = arith.constant 0 : i32
    %c0_i32_1 = arith.constant 0 : i32
    return %c0_i32, %c0_i32_0 : i32, i32
  }
  func.func @transform_4(%arg0: i32) -> (i32, i32) {
    %c0_i32 = arith.constant 0 : i32
    %c0_i32_0 = arith.constant 0 : i32
    %c0_i32_1 = arith.constant 0 : i32
    return %c0_i32, %c0_i32_0 : i32, i32
  }
  func.func @transform_5(%arg0: i32) -> (i32, i32) {
    %c0_i32 = arith.constant 0 : i32
    %c0_i32_0 = arith.constant 0 : i32
    %c0_i32_1 = arith.constant 0 : i32
    return %c0_i32, %c0_i32_0 : i32, i32
  }
  func.func @transform_6(%arg0: i32) -> (i32, i32) {
    %c0_i32 = arith.constant 0 : i32
    %c0_i32_0 = arith.constant 0 : i32
    %c0_i32_1 = arith.constant 0 : i32
    return %c0_i32, %c0_i32_0 : i32, i32
  }
  func.func @transform_7(%arg0: i32) -> (i32, i32, i32) {
    %c0_i32 = arith.constant 0 : i32
    %c0_i32_0 = arith.constant 0 : i32
    %c0_i32_1 = arith.constant 0 : i32
    return %arg0, %c0_i32, %c0_i32_0 : i32, i32, i32
  }
  func.func @transform_8(%arg0: i32) -> (i32, i32) {
    %c0_i32 = arith.constant 0 : i32
    %c0_i32_0 = arith.constant 0 : i32
    %c0_i32_1 = arith.constant 0 : i32
    return %c0_i32, %c0_i32_0 : i32, i32
  }
}

</mosaic_0001>

<llo_original>
// kernel: tpu_custom_call.1
$region0: #{tpu_custom_call.1}
  #allocation0 [shape = 'u32[]', space=smem, size = 0x4, offset = 0x4, fixed_abs, tag = 'smem constant byte address 0x4 - core index']
  #allocation1 [shape = 'u32[144,128]{1,0:T(1,128)}', space=vmem, size = 0x12000, scoped, tag = 'internal scratch']
  #allocation2 [shape = 'f32[8,32]{1,0:T(8,128)}', space=vmem, size = 0x1000, scoped, tag = 'scratch operand']
  %s0 = inlined_call_operand.hbm [shape: f32[1,32], index: 0, kind: input, shape index: {}]
  %s1 = inlined_call_operand.hbm [shape: bf16[8,8,32], index: 1, kind: input, shape index: {}]
  %s2 = inlined_call_operand.hbm [shape: bf16[32,64], index: 2, kind: input, shape index: {}]
  %s3 = inlined_call_operand.hbm [shape: bf16[32,64], index: 3, kind: input, shape index: {}]
  %s4 = inlined_call_operand.vmem [shape: f32[1,64], index: 4, kind: input, shape index: {}]
  %s5 = inlined_call_operand.hbm [shape: bf16[64,256], index: 5, kind: input, shape index: {}]
  %s6 = inlined_call_operand.vmem [shape: f32[1,256], index: 6, kind: input, shape index: {}]
  %s7 = inlined_call_operand.hbm [shape: f32[8,8,128], index: 7, kind: output, shape index: {0}]
  %s8 = inlined_call_operand.hbm [shape: f32[8,32], index: 8, kind: output, shape index: {1}]
  %9 = xla_tuple %s7, %s8
  %s10 = sld [smem:[#allocation0]]
  $region74: #{tpu_custom_call.1} parent=0
    _
  %s12 = ssub.s32 1, %s10
  %s13 = scalar_select 0, %s12, %s10
  $region1: #{tpu_custom_call.1} parent=0
    #allocation3 [shape = 'u8[512]{0}', space=vmem, size = 0x400, scoped, tag = 'input window, operand 0, single buffered']
    #allocation4 [shape = 's32[1]{0}', space=sflag, size = 0x4, scoped, tag = 'scoped memory for tpu_custom_call.1']
    #allocation5 [shape = 's32[1]{0}', space=sflag, size = 0x4, scoped, tag = 'scoped memory for tpu_custom_call.1']
    #allocation6 [shape = 'u8[16384]{0}', space=vmem, size = 0x4000, scoped, tag = 'input window, operand 1, single buffered']
    #allocation7 [shape = 's32[1]{0}', space=sflag, size = 0x4, scoped, tag = 'scoped memory for tpu_custom_call.1']
    #allocation8 [shape = 'u8[8192]{0}', space=vmem, size = 0x2000, scoped, tag = 'input window, operand 2, single buffered']
    #allocation9 [shape = 'u8[8192]{0}', space=vmem, size = 0x2000, scoped, tag = 'input window, operand 3, single buffered']
    #allocation10 [shape = 's32[1]{0}', space=sflag, size = 0x4, scoped, tag = 'scoped memory for tpu_custom_call.1']
    #allocation11 [shape = 'u8[32768]{0}', space=vmem, size = 0x8000, scoped, tag = 'input window, operand 5, single buffered']
    #allocation12 [shape = 'u8[32768]{0}', space=vmem, size = 0x8000, scoped, tag = 'output window, operand 0, single buffered']
    #allocation13 [shape = 'u8[4096]{0}', space=vmem, size = 0x1000, scoped, tag = 'output window, operand 1, single buffered']
    #allocation14 [shape = 's32[1]{0}', space=sflag, size = 0x4, scoped, tag = 'scoped memory for tpu_custom_call.1']
    %14 = vsyncpa [#allocation4], 0
    %15 = vsyncpa [#allocation7], 0
    %16 = vsyncpa [#allocation10], 0
    %17 = vsyncpa [#allocation5], 0
    %18 = vsyncpa [#allocation14], 0
    // Predicated region
    $region2: #{tpu_custom_call.1} parent=1 // pred_check
      _
    $region3: #{tpu_custom_call.1} parent=1 // pred_check_branch
      %20 = sbr.rel (0) target = $region5
    $region4: #{tpu_custom_call.1} parent=1 // pred_region
      %s22 = ssub.s32 16, 16
      %23 = vsyncadd [#allocation4], %s22
      %s25 = sshll.u32 [#allocation3], 4
      %s26 = int_to_ptr.vmem [resolvable:$true] %s25
      %28 = dma.hbm_to_vmem [thread:$0]  %s0, 16, %s26, [#allocation4]
    $region5: #{tpu_custom_call.1} parent=1 // pred_fallthru
      _
    // Predicated region
    $region6: #{tpu_custom_call.1} parent=1 // pred_check
      _
    $region7: #{tpu_custom_call.1} parent=1 // pred_check_branch
      %30 = sbr.rel (0) target = $region9
    $region8: #{tpu_custom_call.1} parent=1 // pred_region
      %s32 = ssub.s32 512, 512
      %33 = vsyncadd [#allocation7], %s32
      %s34 = sshll.u32 [#allocation6], 4
      %s35 = int_to_ptr.vmem [resolvable:$true] %s34
      %40 = dma.hbm_to_vmem [thread:$0]  %s1, 512, %s35, [#allocation7], 64, 64, 4
    $region9: #{tpu_custom_call.1} parent=1 // pred_fallthru
      _
    // Predicated region
    $region10: #{tpu_custom_call.1} parent=1 // pred_check
      _
    $region11: #{tpu_custom_call.1} parent=1 // pred_check_branch
      %42 = sbr.rel (0) target = $region13
    $region12: #{tpu_custom_call.1} parent=1 // pred_region
      %s44 = ssub.s32 256, 256
      %45 = vsyncadd [#allocation7], %s44
      %s46 = sshll.u32 [#allocation8], 4
      %s47 = int_to_ptr.vmem [resolvable:$true] %s46
      %52 = dma.hbm_to_vmem [thread:$0]  %s2, 256, %s47, [#allocation7], 64, 64, 4
    $region13: #{tpu_custom_call.1} parent=1 // pred_fallthru
      _
    // Predicated region
    $region14: #{tpu_custom_call.1} parent=1 // pred_check
      _
    $region15: #{tpu_custom_call.1} parent=1 // pred_check_branch
      %54 = sbr.rel (0) target = $region17
    $region16: #{tpu_custom_call.1} parent=1 // pred_region
      %s56 = ssub.s32 256, 256
      %57 = vsyncadd [#allocation10], %s56
      %s58 = sshll.u32 [#allocation9], 4
      %s59 = int_to_ptr.vmem [resolvable:$true] %s58
      %64 = dma.hbm_to_vmem [thread:$0]  %s3, 256, %s59, [#allocation10], 64, 64, 4
    $region17: #{tpu_custom_call.1} parent=1 // pred_fallthru
      _
    // Predicated region
    $region18: #{tpu_custom_call.1} parent=1 // pred_check
      _
    $region19: #{tpu_custom_call.1} parent=1 // pred_check_branch
      %66 = sbr.rel (0) target = $region21
    $region20: #{tpu_custom_call.1} parent=1 // pred_region
      _
    $region21: #{tpu_custom_call.1} parent=1 // pred_fallthru
      _
    // Predicated region
    $region22: #{tpu_custom_call.1} parent=1 // pred_check
      _
    $region23: #{tpu_custom_call.1} parent=1 // pred_check_branch
      %68 = sbr.rel (0) target = $region25
    $region24: #{tpu_custom_call.1} parent=1 // pred_region
      %s70 = ssub.s32 1024, 1024
      %71 = vsyncadd [#allocation10], %s70
      %s72 = sshll.u32 [#allocation11], 4
      %s73 = int_to_ptr.vmem [resolvable:$true] %s72
      %78 = dma.hbm_to_vmem [thread:$0]  %s5, 1024, %s73, [#allocation10], 128, 128, 8
    $region25: #{tpu_custom_call.1} parent=1 // pred_fallthru
      _
    // Predicated region
    $region26: #{tpu_custom_call.1} parent=1 // pred_check
      _
    $region27: #{tpu_custom_call.1} parent=1 // pred_check_branch
      %80 = sbr.rel (0) target = $region29
    $region28: #{tpu_custom_call.1} parent=1 // pred_region
      _
    $region29: #{tpu_custom_call.1} parent=1 // pred_fallthru
      _
    // Predicated region
    $region30: #{tpu_custom_call.1} parent=1 // pred_check
      _
    $region31: #{tpu_custom_call.1} parent=1 // pred_check_branch
      %82 = sbr.rel (0) target = $region33
    $region32: #{tpu_custom_call.1} parent=1 // pred_region
      %83 = dma.done [#allocation4], 16
    $region33: #{tpu_custom_call.1} parent=1 // pred_fallthru
      _
    // Predicated region
    $region34: #{tpu_custom_call.1} parent=1 // pred_check
      _
    $region35: #{tpu_custom_call.1} parent=1 // pred_check_branch
      %85 = sbr.rel (0) target = $region37
    $region36: #{tpu_custom_call.1} parent=1 // pred_region
      %86 = dma.done [#allocation7], 512
    $region37: #{tpu_custom_call.1} parent=1 // pred_fallthru
      _
    // Predicated region
    $region38: #{tpu_custom_call.1} parent=1 // pred_check
      _
    $region39: #{tpu_custom_call.1} parent=1 // pred_check_branch
      %88 = sbr.rel (0) target = $region41
    $region40: #{tpu_custom_call.1} parent=1 // pred_region
      %89 = dma.done [#allocation7], 256
    $region41: #{tpu_custom_call.1} parent=1 // pred_fallthru
      _
    // Predicated region
    $region42: #{tpu_custom_call.1} parent=1 // pred_check
      _
    $region43: #{tpu_custom_call.1} parent=1 // pred_check_branch
      %91 = sbr.rel (0) target = $region45
    $region44: #{tpu_custom_call.1} parent=1 // pred_region
      %92 = dma.done [#allocation10], 256
    $region45: #{tpu_custom_call.1} parent=1 // pred_fallthru
      _
    // Predicated region
    $region46: #{tpu_custom_call.1} parent=1 // pred_check
      _
    $region47: #{tpu_custom_call.1} parent=1 // pred_check_branch
      %94 = sbr.rel (0) target = $region49
    $region48: #{tpu_custom_call.1} parent=1 // pred_region
      %95 = dma.done [#allocation10], 1024
    $region49: #{tpu_custom_call.1} parent=1 // pred_fallthru
      _
    %p97 = scmp.eq.s32.totalorder 0, 0
    // Predicated region
    $region50: #{tpu_custom_call.1} parent=1 // pred_check
      %p98 = pneg %p97
    $region51: #{tpu_custom_call.1} parent=1 // pred_check_branch
      %100 = sbr.rel (%p98) target = $region53
    $region52: #{tpu_custom_call.1} parent=1 // pred_region
      %v101 = vld [vmem:[#allocation3] sm:$0x1]
      %v103 = vlaneseq
      %v104 = vshrl.u32 %v103, 7
      %v105 = vsub.s32 0, %v104
      %v106 = vrot.slane %v101, %v105
      %vm108 = vcmask 261120
      %109 = vst.msk [vmem:[#allocation2] sm:$0xff] %vm108, %v106
    $region53: #{tpu_custom_call.1} parent=1 // pred_fallthru
      _
    %v110 = vld [vmem:[#allocation8] sm:$0xf]
    %v111 = vld [vmem:[#allocation8 + $0x4] sm:$0xf]
    %v112 = vld [vmem:[#allocation8 + $0x8] sm:$0xf]
    %v113 = vld [vmem:[#allocation8 + $0xc] sm:$0xf]
    %v114 = vld [vmem:[#allocation9] sm:$0xf]
    %v115 = vld [vmem:[#allocation9 + $0x4] sm:$0xf]
    %v116 = vld [vmem:[#allocation9 + $0x8] sm:$0xf]
    %v117 = vld [vmem:[#allocation9 + $0xc] sm:$0xf]
    %v118 = vld [vmem:[#allocation11] sm:$0xff]
    %v119 = vld [vmem:[#allocation11 + $0x8] sm:$0xff]
    %v120 = vld [vmem:[#allocation11 + $0x10] sm:$0xff]
    %v121 = vld [vmem:[#allocation11 + $0x18] sm:$0xff]
    %v122 = vld [vmem:[#allocation11 + $0x20] sm:$0xff]
    %v123 = vld [vmem:[#allocation11 + $0x28] sm:$0xff]
    %v124 = vld [vmem:[#allocation11 + $0x30] sm:$0xff]
    %v125 = vld [vmem:[#allocation11 + $0x38] sm:$0xff]
    %v126 = vld [vmem:[%s4] sm:$0x1]
    %v128 = vlaneseq
    %v129 = vshrl.u32 %v128, 7
    %v130 = vsub.s32 0, %v129
    %v131 = vrot.slane %v126, %v130
    %v133 = vld [vmem:[%s6] sm:$0x3]
    %v135 = vlaneseq
    %v136 = vshrl.u32 %v135, 7
    %v137 = vsub.s32 0, %v136
    %v138 = vrot.slane %v133, %v137
    %v139 = vlaneseq
    %v140 = vshrl.u32 %v139, 7
    %v141 = vsub.s32 1, %v140
    %v142 = vrot.slane %v133, %v141
    %v145 = vld [vmem:[#allocation2] sm:$0xff]
    %v146 = vld [vmem:[#allocation6] sm:$0xf]
    %v147 = vpack.c.bf16 %v145, %v145
    %v152 = vunpack.c.l.b16 %v110
    %v153 = vunpack.c.l.b16 %v111
    %v154 = vunpack.c.l.b16 %v112
    %v155 = vunpack.c.l.b16 %v113
    %v156 = vpack.c.b16 %v153, %v152
    %v157 = vpack.c.b16 %v155, %v154
    %vm160 = vcmask 261120
    %v162 = vsel %vm160, %v147, 0
    %164 = vmatprep.subr.bf16.mxu0 0
    %165 = vmatpush1.bf16.msra.mxu0 %v156
    %166 = vmatprep.subr.bf16.mxu0 0
    %167 = vmatpush1.bf16.msra.mxu0 %v157
    %168 = vmatprep.subr.bf16.mxu0 0
    %169 = vmatpush1.bf16.msra.mxu0 0
    %170 = vmatprep.subr.bf16.mxu0 0
    %171 = vmatpush1.bf16.msra.mxu0 0
    %172 = vmatprep.subr.bf16.mxu0 0
    %173 = vmatpush1.bf16.msra.mxu0 0
    %174 = vmatprep.subr.bf16.mxu0 0
    %175 = vmatpush1.bf16.msra.mxu0 0
    %176 = vmatprep.subr.bf16.mxu0 0
    %177 = vmatpush1.bf16.msra.mxu0 0
    %178 = vmatprep.subr.bf16.mxu0 0
    %179 = vmatpush1.bf16.msra.mxu0 0
    %180 = vmatprep.subr.bf16.mxu0 0
    %181 = vmatpush1.bf16.msra.mxu0 0
    %182 = vmatprep.subr.bf16.mxu0 0
    %183 = vmatpush1.bf16.msra.mxu0 0
    %184 = vmatprep.subr.bf16.mxu0 0
    %185 = vmatpush1.bf16.msra.mxu0 0
    %186 = vmatprep.subr.bf16.mxu0 0
    %187 = vmatpush1.bf16.msra.mxu0 0
    %188 = vmatprep.subr.bf16.mxu0 0
    %189 = vmatpush1.bf16.msra.mxu0 0
    %190 = vmatprep.subr.bf16.mxu0 0
    %191 = vmatpush1.bf16.msra.mxu0 0
    %192 = vmatprep.subr.bf16.mxu0 0
    %193 = vmatpush1.bf16.msra.mxu0 0
    %194 = vmatprep.subr.bf16.mxu0 0
    %195 = vmatpush1.bf16.msra.mxu0 0
    %196 = vmatprep.mubr.bf16.mxu0 0
    %197 = vmatmul.mubr.bf16.gmra.mrb[0].mxu0 %v162
    %v198 = vpop.f32.mrb[0].mxu0
    %v199 = vadd.f32 0.0, %v198
    %v200 = vpop.f32.mrb[0].mxu0
    %v201 = vpop.f32.mrb[0].mxu0
    %v202 = vpop.f32.mrb[0].mxu0
    %203 = vdwg.mxu0
    %v208 = vunpack.c.l.b16 %v114
    %v209 = vunpack.c.l.b16 %v115
    %v210 = vunpack.c.l.b16 %v116
    %v211 = vunpack.c.l.b16 %v117
    %v212 = vpack.c.b16 %v209, %v208
    %v213 = vpack.c.b16 %v211, %v210
    %v217 = vsel %vm160, %v146, 0
    %219 = vmatprep.subr.bf16.mxu0 0
    %220 = vmatpush1.bf16.msra.mxu0 %v212
    %221 = vmatprep.subr.bf16.mxu0 0
    %222 = vmatpush1.bf16.msra.mxu0 %v213
    %223 = vmatprep.subr.bf16.mxu0 0
    %224 = vmatpush1.bf16.msra.mxu0 0
    %225 = vmatprep.subr.bf16.mxu0 0
    %226 = vmatpush1.bf16.msra.mxu0 0
    %227 = vmatprep.subr.bf16.mxu0 0
    %228 = vmatpush1.bf16.msra.mxu0 0
    %229 = vmatprep.subr.bf16.mxu0 0
    %230 = vmatpush1.bf16.msra.mxu0 0
    %231 = vmatprep.subr.bf16.mxu0 0
    %232 = vmatpush1.bf16.msra.mxu0 0
    %233 = vmatprep.subr.bf16.mxu0 0
    %234 = vmatpush1.bf16.msra.mxu0 0
    %235 = vmatprep.subr.bf16.mxu0 0
    %236 = vmatpush1.bf16.msra.mxu0 0
    %237 = vmatprep.subr.bf16.mxu0 0
    %238 = vmatpush1.bf16.msra.mxu0 0
    %239 = vmatprep.subr.bf16.mxu0 0
    %240 = vmatpush1.bf16.msra.mxu0 0
    %241 = vmatprep.subr.bf16.mxu0 0
    %242 = vmatpush1.bf16.msra.mxu0 0
    %243 = vmatprep.subr.bf16.mxu0 0
    %244 = vmatpush1.bf16.msra.mxu0 0
    %245 = vmatprep.subr.bf16.mxu0 0
    %246 = vmatpush1.bf16.msra.mxu0 0
    %247 = vmatprep.subr.bf16.mxu0 0
    %248 = vmatpush1.bf16.msra.mxu0 0
    %249 = vmatprep.subr.bf16.mxu0 0
    %250 = vmatpush1.bf16.msra.mxu0 0
    %251 = vmatprep.mubr.bf16.mxu0 0
    %252 = vmatmul.mubr.bf16.gmra.mrb[0].mxu0 %v217
    %v253 = vpop.f32.mrb[0].mxu0
    %v254 = vadd.f32 %v199, %v253
    %v255 = vpop.f32.mrb[0].mxu0
    %v256 = vpop.f32.mrb[0].mxu0
    %v257 = vpop.f32.mrb[0].mxu0
    %258 = vdwg.mxu0
    %v259 = vadd.f32 %v254, %v131
    %v260 = vmax.f32 %v259, 0.0
    %v261 = vpack.c.bf16 %v260, %v260
    %v270 = vunpack.c.l.b16 %v118
    %v271 = vunpack.c.h.b16 %v118
    %v272 = vunpack.c.l.b16 %v119
    %v273 = vunpack.c.h.b16 %v119
    %v274 = vunpack.c.l.b16 %v120
    %v275 = vunpack.c.h.b16 %v120
    %v276 = vunpack.c.l.b16 %v121
    %v277 = vunpack.c.h.b16 %v121
    %v278 = vunpack.c.l.b16 %v122
    %v279 = vunpack.c.h.b16 %v122
    %v280 = vunpack.c.l.b16 %v123
    %v281 = vunpack.c.h.b16 %v123
    %v282 = vunpack.c.l.b16 %v124
    %v283 = vunpack.c.h.b16 %v124
    %v284 = vunpack.c.l.b16 %v125
    %v285 = vunpack.c.h.b16 %v125
    %v286 = vpack.c.b16 %v272, %v270
    %v287 = vpack.c.b16 %v273, %v271
    %v288 = vpack.c.b16 %v276, %v274
    %v289 = vpack.c.b16 %v277, %v275
    %v290 = vpack.c.b16 %v280, %v278
    %v291 = vpack.c.b16 %v281, %v279
    %v292 = vpack.c.b16 %v284, %v282
    %v293 = vpack.c.b16 %v285, %v283
    %vm302 = vcmask 523264
    %v304 = vsel %vm302, %v261, 0
    %306 = vmatprep.subr.bf16.mxu0 %v287
    %307 = vmatpush1.bf16.msra.mxu0 %v286
    %308 = vmatprep.subr.bf16.mxu0 %v289
    %309 = vmatpush1.bf16.msra.mxu0 %v288
    %310 = vmatprep.subr.bf16.mxu0 %v291
    %311 = vmatpush1.bf16.msra.mxu0 %v290
    %312 = vmatprep.subr.bf16.mxu0 %v293
    %313 = vmatpush1.bf16.msra.mxu0 %v292
    %314 = vmatprep.subr.bf16.mxu0 0
    %315 = vmatpush1.bf16.msra.mxu0 0
    %316 = vmatprep.subr.bf16.mxu0 0
    %317 = vmatpush1.bf16.msra.mxu0 0
    %318 = vmatprep.subr.bf16.mxu0 0
    %319 = vmatpush1.bf16.msra.mxu0 0
    %320 = vmatprep.subr.bf16.mxu0 0
    %321 = vmatpush1.bf16.msra.mxu0 0
    %322 = vmatprep.subr.bf16.mxu0 0
    %323 = vmatpush1.bf16.msra.mxu0 0
    %324 = vmatprep.subr.bf16.mxu0 0
    %325 = vmatpush1.bf16.msra.mxu0 0
    %326 = vmatprep.subr.bf16.mxu0 0
    %327 = vmatpush1.bf16.msra.mxu0 0
    %328 = vmatprep.subr.bf16.mxu0 0
    %329 = vmatpush1.bf16.msra.mxu0 0
    %330 = vmatprep.subr.bf16.mxu0 0
    %331 = vmatpush1.bf16.msra.mxu0 0
    %332 = vmatprep.subr.bf16.mxu0 0
    %333 = vmatpush1.bf16.msra.mxu0 0
    %334 = vmatprep.subr.bf16.mxu0 0
    %335 = vmatpush1.bf16.msra.mxu0 0
    %336 = vmatprep.subr.bf16.mxu0 0
    %337 = vmatpush1.bf16.msra.mxu0 0
    %338 = vmatprep.mubr.bf16.mxu0 0
    %339 = vmatmul.mubr.bf16.gmra.mrb[0].mxu0 %v304
    %v340 = vpop.f32.mrb[0].mxu0
    %v341 = vadd.f32 %v138, %v340
    %v342 = vpop.f32.mrb[0].mxu0
    %v343 = vadd.f32 %v142, %v342
    %v344 = vpop.f32.mrb[0].mxu0
    %v345 = vpop.f32.mrb[0].mxu0
    %346 = vdwg.mxu0
    %347 = vst [vmem:[#allocation12] sm:$0xff] %v343
    %s348 = scalar_lea.vmem [#allocation6], 4
    %v349 = vld [vmem:[%s348] sm:$0xf]
    %v350 = vpack.c.bf16 %v341, %v341
    %v352 = vsel %vm160, %v350, 0
    %354 = vmatprep.subr.bf16.mxu0 0
    %355 = vmatpush1.bf16.msra.mxu0 %v156
    %356 = vmatprep.subr.bf16.mxu0 0
    %357 = vmatpush1.bf16.msra.mxu0 %v157
    %358 = vmatprep.subr.bf16.mxu0 0
    %359 = vmatpush1.bf16.msra.mxu0 0
    %360 = vmatprep.subr.bf16.mxu0 0
    %361 = vmatpush1.bf16.msra.mxu0 0
    %362 = vmatprep.subr.bf16.mxu0 0
    %363 = vmatpush1.bf16.msra.mxu0 0
    %364 = vmatprep.subr.bf16.mxu0 0
    %365 = vmatpush1.bf16.msra.mxu0 0
    %366 = vmatprep.subr.bf16.mxu0 0
    %367 = vmatpush1.bf16.msra.mxu0 0
    %368 = vmatprep.subr.bf16.mxu0 0
    %369 = vmatpush1.bf16.msra.mxu0 0
    %370 = vmatprep.subr.bf16.mxu0 0
    %371 = vmatpush1.bf16.msra.mxu0 0
    %372 = vmatprep.subr.bf16.mxu0 0
    %373 = vmatpush1.bf16.msra.mxu0 0
    %374 = vmatprep.subr.bf16.mxu0 0
    %375 = vmatpush1.bf16.msra.mxu0 0
    %376 = vmatprep.subr.bf16.mxu0 0
    %377 = vmatpush1.bf16.msra.mxu0 0
    %378 = vmatprep.subr.bf16.mxu0 0
    %379 = vmatpush1.bf16.msra.mxu0 0
    %380 = vmatprep.subr.bf16.mxu0 0
    %381 = vmatpush1.bf16.msra.mxu0 0
    %382 = vmatprep.subr.bf16.mxu0 0
    %383 = vmatpush1.bf16.msra.mxu0 0
    %384 = vmatprep.subr.bf16.mxu0 0
    %385 = vmatpush1.bf16.msra.mxu0 0
    %386 = vmatprep.mubr.bf16.mxu0 0
    %387 = vmatmul.mubr.bf16.gmra.mrb[0].mxu0 %v352
    %v388 = vpop.f32.mrb[0].mxu0
    %v389 = vadd.f32 0.0, %v388
    %v390 = vpop.f32.mrb[0].mxu0
    %v391 = vpop.f32.mrb[0].mxu0
    %v392 = vpop.f32.mrb[0].mxu0
    %393 = vdwg.mxu0
    %v395 = vsel %vm160, %v349, 0
    %397 = vmatprep.subr.bf16.mxu0 0
    %398 = vmatpush1.bf16.msra.mxu0 %v212
    %399 = vmatprep.subr.bf16.mxu0 0
    %400 = vmatpush1.bf16.msra.mxu0 %v213
    %401 = vmatprep.subr.bf16.mxu0 0
    %402 = vmatpush1.bf16.msra.mxu0 0
    %403 = vmatprep.subr.bf16.mxu0 0
    %404 = vmatpush1.bf16.msra.mxu0 0
    %405 = vmatprep.subr.bf16.mxu0 0
    %406 = vmatpush1.bf16.msra.mxu0 0
    %407 = vmatprep.subr.bf16.mxu0 0
    %408 = vmatpush1.bf16.msra.mxu0 0
    %409 = vmatprep.subr.bf16.mxu0 0
    %410 = vmatpush1.bf16.msra.mxu0 0
    %411 = vmatprep.subr.bf16.mxu0 0
    %412 = vmatpush1.bf16.msra.mxu0 0
    %413 = vmatprep.subr.bf16.mxu0 0
    %414 = vmatpush1.bf16.msra.mxu0 0
    %415 = vmatprep.subr.bf16.mxu0 0
    %416 = vmatpush1.bf16.msra.mxu0 0
    %417 = vmatprep.subr.bf16.mxu0 0
    %418 = vmatpush1.bf16.msra.mxu0 0
    %419 = vmatprep.subr.bf16.mxu0 0
    %420 = vmatpush1.bf16.msra.mxu0 0
    %421 = vmatprep.subr.bf16.mxu0 0
    %422 = vmatpush1.bf16.msra.mxu0 0
    %423 = vmatprep.subr.bf16.mxu0 0
    %424 = vmatpush1.bf16.msra.mxu0 0
    %425 = vmatprep.subr.bf16.mxu0 0
    %426 = vmatpush1.bf16.msra.mxu0 0
    %427 = vmatprep.subr.bf16.mxu0 0
    %428 = vmatpush1.bf16.msra.mxu0 0
    %429 = vmatprep.mubr.bf16.mxu0 0
    %430 = vmatmul.mubr.bf16.gmra.mrb[0].mxu0 %v395
    %v431 = vpop.f32.mrb[0].mxu0
    %v432 = vadd.f32 %v389, %v431
    %v433 = vpop.f32.mrb[0].mxu0
    %v434 = vpop.f32.mrb[0].mxu0
    %v435 = vpop.f32.mrb[0].mxu0
    %436 = vdwg.mxu0
    %v437 = vadd.f32 %v432, %v131
    %v438 = vmax.f32 %v437, 0.0
    %v439 = vpack.c.bf16 %v438, %v438
    %v441 = vsel %vm302, %v439, 0
    %443 = vmatprep.subr.bf16.mxu0 %v287
    %444 = vmatpush1.bf16.msra.mxu0 %v286
    %445 = vmatprep.subr.bf16.mxu0 %v289
    %446 = vmatpush1.bf16.msra.mxu0 %v288
    %447 = vmatprep.subr.bf16.mxu0 %v291
    %448 = vmatpush1.bf16.msra.mxu0 %v290
    %449 = vmatprep.subr.bf16.mxu0 %v293
    %450 = vmatpush1.bf16.msra.mxu0 %v292
    %451 = vmatprep.subr.bf16.mxu0 0
    %452 = vmatpush1.bf16.msra.mxu0 0
    %453 = vmatprep.subr.bf16.mxu0 0
    %454 = vmatpush1.bf16.msra.mxu0 0
    %455 = vmatprep.subr.bf16.mxu0 0
    %456 = vmatpush1.bf16.msra.mxu0 0
    %457 = vmatprep.subr.bf16.mxu0 0
    %458 = vmatpush1.bf16.msra.mxu0 0
    %459 = vmatprep.subr.bf16.mxu0 0
    %460 = vmatpush1.bf16.msra.mxu0 0
    %461 = vmatprep.subr.bf16.mxu0 0
    %462 = vmatpush1.bf16.msra.mxu0 0
    %463 = vmatprep.subr.bf16.mxu0 0
    %464 = vmatpush1.bf16.msra.mxu0 0
    %465 = vmatprep.subr.bf16.mxu0 0
    %466 = vmatpush1.bf16.msra.mxu0 0
    %467 = vmatprep.subr.bf16.mxu0 0
    %468 = vmatpush1.bf16.msra.mxu0 0
    %469 = vmatprep.subr.bf16.mxu0 0
    %470 = vmatpush1.bf16.msra.mxu0 0
    %471 = vmatprep.subr.bf16.mxu0 0
    %472 = vmatpush1.bf16.msra.mxu0 0
    %473 = vmatprep.subr.bf16.mxu0 0
    %474 = vmatpush1.bf16.msra.mxu0 0
    %475 = vmatprep.mubr.bf16.mxu0 0
    %476 = vmatmul.mubr.bf16.gmra.mrb[0].mxu0 %v441
    %v477 = vpop.f32.mrb[0].mxu0
    %v478 = vadd.f32 %v138, %v477
    %v479 = vpop.f32.mrb[0].mxu0
    %v480 = vadd.f32 %v142, %v479
    %v481 = vpop.f32.mrb[0].mxu0
    %v482 = vpop.f32.mrb[0].mxu0
    %483 = vdwg.mxu0
    %s484 = scalar_lea.vmem [#allocation12], 8
    %485 = vst [vmem:[%s484] sm:$0xff] %v480
    %s486 = scalar_lea.vmem [#allocation6], 8
    %v487 = vld [vmem:[%s486] sm:$0xf]
    %v488 = vpack.c.bf16 %v478, %v478
    %v490 = vsel %vm160, %v488, 0
    %492 = vmatprep.subr.bf16.mxu0 0
    %493 = vmatpush1.bf16.msra.mxu0 %v156
    %494 = vmatprep.subr.bf16.mxu0 0
    %495 = vmatpush1.bf16.msra.mxu0 %v157
    %496 = vmatprep.subr.bf16.mxu0 0
    %497 = vmatpush1.bf16.msra.mxu0 0
    %498 = vmatprep.subr.bf16.mxu0 0
    %499 = vmatpush1.bf16.msra.mxu0 0
    %500 = vmatprep.subr.bf16.mxu0 0
    %501 = vmatpush1.bf16.msra.mxu0 0
    %502 = vmatprep.subr.bf16.mxu0 0
    %503 = vmatpush1.bf16.msra.mxu0 0
    %504 = vmatprep.subr.bf16.mxu0 0
    %505 = vmatpush1.bf16.msra.mxu0 0
    %506 = vmatprep.subr.bf16.mxu0 0
    %507 = vmatpush1.bf16.msra.mxu0 0
    %508 = vmatprep.subr.bf16.mxu0 0
    %509 = vmatpush1.bf16.msra.mxu0 0
    %510 = vmatprep.subr.bf16.mxu0 0
    %511 = vmatpush1.bf16.msra.mxu0 0
    %512 = vmatprep.subr.bf16.mxu0 0
    %513 = vmatpush1.bf16.msra.mxu0 0
    %514 = vmatprep.subr.bf16.mxu0 0
    %515 = vmatpush1.bf16.msra.mxu0 0
    %516 = vmatprep.subr.bf16.mxu0 0
    %517 = vmatpush1.bf16.msra.mxu0 0
    %518 = vmatprep.subr.bf16.mxu0 0
    %519 = vmatpush1.bf16.msra.mxu0 0
    %520 = vmatprep.subr.bf16.mxu0 0
    %521 = vmatpush1.bf16.msra.mxu0 0
    %522 = vmatprep.subr.bf16.mxu0 0
    %523 = vmatpush1.bf16.msra.mxu0 0
    %524 = vmatprep.mubr.bf16.mxu0 0
    %525 = vmatmul.mubr.bf16.gmra.mrb[0].mxu0 %v490
    %v526 = vpop.f32.mrb[0].mxu0
    %v527 = vadd.f32 0.0, %v526
    %v528 = vpop.f32.mrb[0].mxu0
    %v529 = vpop.f32.mrb[0].mxu0
    %v530 = vpop.f32.mrb[0].mxu0
    %531 = vdwg.mxu0
    %v533 = vsel %vm160, %v487, 0
    %535 = vmatprep.subr.bf16.mxu0 0
    %536 = vmatpush1.bf16.msra.mxu0 %v212
    %537 = vmatprep.subr.bf16.mxu0 0
    %538 = vmatpush1.bf16.msra.mxu0 %v213
    %539 = vmatprep.subr.bf16.mxu0 0
    %540 = vmatpush1.bf16.msra.mxu0 0
    %541 = vmatprep.subr.bf16.mxu0 0
    %542 = vmatpush1.bf16.msra.mxu0 0
    %543 = vmatprep.subr.bf16.mxu0 0
    %544 = vmatpush1.bf16.msra.mxu0 0
    %545 = vmatprep.subr.bf16.mxu0 0
    %546 = vmatpush1.bf16.msra.mxu0 0
    %547 = vmatprep.subr.bf16.mxu0 0
    %548 = vmatpush1.bf16.msra.mxu0 0
    %549 = vmatprep.subr.bf16.mxu0 0
    %550 = vmatpush1.bf16.msra.mxu0 0
    %551 = vmatprep.subr.bf16.mxu0 0
    %552 = vmatpush1.bf16.msra.mxu0 0
    %553 = vmatprep.subr.bf16.mxu0 0
    %554 = vmatpush1.bf16.msra.mxu0 0
    %555 = vmatprep.subr.bf16.mxu0 0
    %556 = vmatpush1.bf16.msra.mxu0 0
    %557 = vmatprep.subr.bf16.mxu0 0
    %558 = vmatpush1.bf16.msra.mxu0 0
    %559 = vmatprep.subr.bf16.mxu0 0
    %560 = vmatpush1.bf16.msra.mxu0 0
    %561 = vmatprep.subr.bf16.mxu0 0
    %562 = vmatpush1.bf16.msra.mxu0 0
    %563 = vmatprep.subr.bf16.mxu0 0
    %564 = vmatpush1.bf16.msra.mxu0 0
    %565 = vmatprep.subr.bf16.mxu0 0
    %566 = vmatpush1.bf16.msra.mxu0 0
    %567 = vmatprep.mubr.bf16.mxu0 0
    %568 = vmatmul.mubr.bf16.gmra.mrb[0].mxu0 %v533
    %v569 = vpop.f32.mrb[0].mxu0
    %v570 = vadd.f32 %v527, %v569
    %v571 = vpop.f32.mrb[0].mxu0
    %v572 = vpop.f32.mrb[0].mxu0
    %v573 = vpop.f32.mrb[0].mxu0
    %574 = vdwg.mxu0
    %v575 = vadd.f32 %v570, %v131
    %v576 = vmax.f32 %v575, 0.0
    %v577 = vpack.c.bf16 %v576, %v576
    %v579 = vsel %vm302, %v577, 0
    %581 = vmatprep.subr.bf16.mxu0 %v287
    %582 = vmatpush1.bf16.msra.mxu0 %v286
    %583 = vmatprep.subr.bf16.mxu0 %v289
    %584 = vmatpush1.bf16.msra.mxu0 %v288
    %585 = vmatprep.subr.bf16.mxu0 %v291
    %586 = vmatpush1.bf16.msra.mxu0 %v290
    %587 = vmatprep.subr.bf16.mxu0 %v293
    %588 = vmatpush1.bf16.msra.mxu0 %v292
    %589 = vmatprep.subr.bf16.mxu0 0
    %590 = vmatpush1.bf16.msra.mxu0 0
    %591 = vmatprep.subr.bf16.mxu0 0
    %592 = vmatpush1.bf16.msra.mxu0 0
    %593 = vmatprep.subr.bf16.mxu0 0
    %594 = vmatpush1.bf16.msra.mxu0 0
    %595 = vmatprep.subr.bf16.mxu0 0
    %596 = vmatpush1.bf16.msra.mxu0 0
    %597 = vmatprep.subr.bf16.mxu0 0
    %598 = vmatpush1.bf16.msra.mxu0 0
    %599 = vmatprep.subr.bf16.mxu0 0
    %600 = vmatpush1.bf16.msra.mxu0 0
    %601 = vmatprep.subr.bf16.mxu0 0
    %602 = vmatpush1.bf16.msra.mxu0 0
    %603 = vmatprep.subr.bf16.mxu0 0
    %604 = vmatpush1.bf16.msra.mxu0 0
    %605 = vmatprep.subr.bf16.mxu0 0
    %606 = vmatpush1.bf16.msra.mxu0 0
    %607 = vmatprep.subr.bf16.mxu0 0
    %608 = vmatpush1.bf16.msra.mxu0 0
    %609 = vmatprep.subr.bf16.mxu0 0
    %610 = vmatpush1.bf16.msra.mxu0 0
    %611 = vmatprep.subr.bf16.mxu0 0
    %612 = vmatpush1.bf16.msra.mxu0 0
    %613 = vmatprep.mubr.bf16.mxu0 0
    %614 = vmatmul.mubr.bf16.gmra.mrb[0].mxu0 %v579
    %v615 = vpop.f32.mrb[0].mxu0
    %v616 = vadd.f32 %v138, %v615
    %v617 = vpop.f32.mrb[0].mxu0
    %v618 = vadd.f32 %v142, %v617
    %v619 = vpop.f32.mrb[0].mxu0
    %v620 = vpop.f32.mrb[0].mxu0
    %621 = vdwg.mxu0
    %s622 = scalar_lea.vmem [#allocation12], 16
    %623 = vst [vmem:[%s622] sm:$0xff] %v618
    %s624 = scalar_lea.vmem [#allocation6], 12
    %v625 = vld [vmem:[%s624] sm:$0xf]
    %v626 = vpack.c.bf16 %v616, %v616
    %v628 = vsel %vm160, %v626, 0
    %630 = vmatprep.subr.bf16.mxu0 0
    %631 = vmatpush1.bf16.msra.mxu0 %v156
    %632 = vmatprep.subr.bf16.mxu0 0
    %633 = vmatpush1.bf16.msra.mxu0 %v157
    %634 = vmatprep.subr.bf16.mxu0 0
    %635 = vmatpush1.bf16.msra.mxu0 0
    %636 = vmatprep.subr.bf16.mxu0 0
    %637 = vmatpush1.bf16.msra.mxu0 0
    %638 = vmatprep.subr.bf16.mxu0 0
    %639 = vmatpush1.bf16.msra.mxu0 0
    %640 = vmatprep.subr.bf16.mxu0 0
    %641 = vmatpush1.bf16.msra.mxu0 0
    %642 = vmatprep.subr.bf16.mxu0 0
    %643 = vmatpush1.bf16.msra.mxu0 0
    %644 = vmatprep.subr.bf16.mxu0 0
    %645 = vmatpush1.bf16.msra.mxu0 0
    %646 = vmatprep.subr.bf16.mxu0 0
    %647 = vmatpush1.bf16.msra.mxu0 0
    %648 = vmatprep.subr.bf16.mxu0 0
    %649 = vmatpush1.bf16.msra.mxu0 0
    %650 = vmatprep.subr.bf16.mxu0 0
    %651 = vmatpush1.bf16.msra.mxu0 0
    %652 = vmatprep.subr.bf16.mxu0 0
    %653 = vmatpush1.bf16.msra.mxu0 0
    %654 = vmatprep.subr.bf16.mxu0 0
    %655 = vmatpush1.bf16.msra.mxu0 0
    %656 = vmatprep.subr.bf16.mxu0 0
    %657 = vmatpush1.bf16.msra.mxu0 0
    %658 = vmatprep.subr.bf16.mxu0 0
    %659 = vmatpush1.bf16.msra.mxu0 0
    %660 = vmatprep.subr.bf16.mxu0 0
    %661 = vmatpush1.bf16.msra.mxu0 0
    %662 = vmatprep.mubr.bf16.mxu0 0
    %663 = vmatmul.mubr.bf16.gmra.mrb[0].mxu0 %v628
    %v664 = vpop.f32.mrb[0].mxu0
    %v665 = vadd.f32 0.0, %v664
    %v666 = vpop.f32.mrb[0].mxu0
    %v667 = vpop.f32.mrb[0].mxu0
    %v668 = vpop.f32.mrb[0].mxu0
    %669 = vdwg.mxu0
    %v671 = vsel %vm160, %v625, 0
    %673 = vmatprep.subr.bf16.mxu0 0
    %674 = vmatpush1.bf16.msra.mxu0 %v212
    %675 = vmatprep.subr.bf16.mxu0 0
    %676 = vmatpush1.bf16.msra.mxu0 %v213
    %677 = vmatprep.subr.bf16.mxu0 0
    %678 = vmatpush1.bf16.msra.mxu0 0
    %679 = vmatprep.subr.bf16.mxu0 0
    %680 = vmatpush1.bf16.msra.mxu0 0
    %681 = vmatprep.subr.bf16.mxu0 0
    %682 = vmatpush1.bf16.msra.mxu0 0
    %683 = vmatprep.subr.bf16.mxu0 0
    %684 = vmatpush1.bf16.msra.mxu0 0
    %685 = vmatprep.subr.bf16.mxu0 0
    %686 = vmatpush1.bf16.msra.mxu0 0
    %687 = vmatprep.subr.bf16.mxu0 0
    %688 = vmatpush1.bf16.msra.mxu0 0
    %689 = vmatprep.subr.bf16.mxu0 0
    %690 = vmatpush1.bf16.msra.mxu0 0
    %691 = vmatprep.subr.bf16.mxu0 0
    %692 = vmatpush1.bf16.msra.mxu0 0
    %693 = vmatprep.subr.bf16.mxu0 0
    %694 = vmatpush1.bf16.msra.mxu0 0
    %695 = vmatprep.subr.bf16.mxu0 0
    %696 = vmatpush1.bf16.msra.mxu0 0
    %697 = vmatprep.subr.bf16.mxu0 0
    %698 = vmatpush1.bf16.msra.mxu0 0
    %699 = vmatprep.subr.bf16.mxu0 0
    %700 = vmatpush1.bf16.msra.mxu0 0
    %701 = vmatprep.subr.bf16.mxu0 0
    %702 = vmatpush1.bf16.msra.mxu0 0
    %703 = vmatprep.subr.bf16.mxu0 0
    %704 = vmatpush1.bf16.msra.mxu0 0
    %705 = vmatprep.mubr.bf16.mxu0 0
    %706 = vmatmul.mubr.bf16.gmra.mrb[0].mxu0 %v671
    %v707 = vpop.f32.mrb[0].mxu0
    %v708 = vadd.f32 %v665, %v707
    %v709 = vpop.f32.mrb[0].mxu0
    %v710 = vpop.f32.mrb[0].mxu0
    %v711 = vpop.f32.mrb[0].mxu0
    %712 = vdwg.mxu0
    %v713 = vadd.f32 %v708, %v131
    %v714 = vmax.f32 %v713, 0.0
    %v715 = vpack.c.bf16 %v714, %v714
    %v717 = vsel %vm302, %v715, 0
    %719 = vmatprep.subr.bf16.mxu0 %v287
    %720 = vmatpush1.bf16.msra.mxu0 %v286
    %721 = vmatprep.subr.bf16.mxu0 %v289
    %722 = vmatpush1.bf16.msra.mxu0 %v288
    %723 = vmatprep.subr.bf16.mxu0 %v291
    %724 = vmatpush1.bf16.msra.mxu0 %v290
    %725 = vmatprep.subr.bf16.mxu0 %v293
    %726 = vmatpush1.bf16.msra.mxu0 %v292
    %727 = vmatprep.subr.bf16.mxu0 0
    %728 = vmatpush1.bf16.msra.mxu0 0
    %729 = vmatprep.subr.bf16.mxu0 0
    %730 = vmatpush1.bf16.msra.mxu0 0
    %731 = vmatprep.subr.bf16.mxu0 0
    %732 = vmatpush1.bf16.msra.mxu0 0
    %733 = vmatprep.subr.bf16.mxu0 0
    %734 = vmatpush1.bf16.msra.mxu0 0
    %735 = vmatprep.subr.bf16.mxu0 0
    %736 = vmatpush1.bf16.msra.mxu0 0
    %737 = vmatprep.subr.bf16.mxu0 0
    %738 = vmatpush1.bf16.msra.mxu0 0
    %739 = vmatprep.subr.bf16.mxu0 0
    %740 = vmatpush1.bf16.msra.mxu0 0
    %741 = vmatprep.subr.bf16.mxu0 0
    %742 = vmatpush1.bf16.msra.mxu0 0
    %743 = vmatprep.subr.bf16.mxu0 0
    %744 = vmatpush1.bf16.msra.mxu0 0
    %745 = vmatprep.subr.bf16.mxu0 0
    %746 = vmatpush1.bf16.msra.mxu0 0
    %747 = vmatprep.subr.bf16.mxu0 0
    %748 = vmatpush1.bf16.msra.mxu0 0
    %749 = vmatprep.subr.bf16.mxu0 0
    %750 = vmatpush1.bf16.msra.mxu0 0
    %751 = vmatprep.mubr.bf16.mxu0 0
    %752 = vmatmul.mubr.bf16.gmra.mrb[0].mxu0 %v717
    %v753 = vpop.f32.mrb[0].mxu0
    %v754 = vadd.f32 %v138, %v753
    %v755 = vpop.f32.mrb[0].mxu0
    %v756 = vadd.f32 %v142, %v755
    %v757 = vpop.f32.mrb[0].mxu0
    %v758 = vpop.f32.mrb[0].mxu0
    %759 = vdwg.mxu0
    %s760 = scalar_lea.vmem [#allocation12], 24
    %761 = vst [vmem:[%s760] sm:$0xff] %v756
    %s762 = scalar_lea.vmem [#allocation6], 16
    %v763 = vld [vmem:[%s762] sm:$0xf]
    %v764 = vpack.c.bf16 %v754, %v754
    %v766 = vsel %vm160, %v764, 0
    %768 = vmatprep.subr.bf16.mxu0 0
    %769 = vmatpush1.bf16.msra.mxu0 %v156
    %770 = vmatprep.subr.bf16.mxu0 0
    %771 = vmatpush1.bf16.msra.mxu0 %v157
    %772 = vmatprep.subr.bf16.mxu0 0
    %773 = vmatpush1.bf16.msra.mxu0 0
    %774 = vmatprep.subr.bf16.mxu0 0
    %775 = vmatpush1.bf16.msra.mxu0 0
    %776 = vmatprep.subr.bf16.mxu0 0
    %777 = vmatpush1.bf16.msra.mxu0 0
    %778 = vmatprep.subr.bf16.mxu0 0
    %779 = vmatpush1.bf16.msra.mxu0 0
    %780 = vmatprep.subr.bf16.mxu0 0
    %781 = vmatpush1.bf16.msra.mxu0 0
    %782 = vmatprep.subr.bf16.mxu0 0
    %783 = vmatpush1.bf16.msra.mxu0 0
    %784 = vmatprep.subr.bf16.mxu0 0
    %785 = vmatpush1.bf16.msra.mxu0 0
    %786 = vmatprep.subr.bf16.mxu0 0
    %787 = vmatpush1.bf16.msra.mxu0 0
    %788 = vmatprep.subr.bf16.mxu0 0
    %789 = vmatpush1.bf16.msra.mxu0 0
    %790 = vmatprep.subr.bf16.mxu0 0
    %791 = vmatpush1.bf16.msra.mxu0 0
    %792 = vmatprep.subr.bf16.mxu0 0
    %793 = vmatpush1.bf16.msra.mxu0 0
    %794 = vmatprep.subr.bf16.mxu0 0
    %795 = vmatpush1.bf16.msra.mxu0 0
    %796 = vmatprep.subr.bf16.mxu0 0
    %797 = vmatpush1.bf16.msra.mxu0 0
    %798 = vmatprep.subr.bf16.mxu0 0
    %799 = vmatpush1.bf16.msra.mxu0 0
    %800 = vmatprep.mubr.bf16.mxu0 0
    %801 = vmatmul.mubr.bf16.gmra.mrb[0].mxu0 %v766
    %v802 = vpop.f32.mrb[0].mxu0
    %v803 = vadd.f32 0.0, %v802
    %v804 = vpop.f32.mrb[0].mxu0
    %v805 = vpop.f32.mrb[0].mxu0
    %v806 = vpop.f32.mrb[0].mxu0
    %807 = vdwg.mxu0
    %v809 = vsel %vm160, %v763, 0
    %811 = vmatprep.subr.bf16.mxu0 0
    %812 = vmatpush1.bf16.msra.mxu0 %v212
    %813 = vmatprep.subr.bf16.mxu0 0
    %814 = vmatpush1.bf16.msra.mxu0 %v213
    %815 = vmatprep.subr.bf16.mxu0 0
    %816 = vmatpush1.bf16.msra.mxu0 0
    %817 = vmatprep.subr.bf16.mxu0 0
    %818 = vmatpush1.bf16.msra.mxu0 0
    %819 = vmatprep.subr.bf16.mxu0 0
    %820 = vmatpush1.bf16.msra.mxu0 0
    %821 = vmatprep.subr.bf16.mxu0 0
    %822 = vmatpush1.bf16.msra.mxu0 0
    %823 = vmatprep.subr.bf16.mxu0 0
    %824 = vmatpush1.bf16.msra.mxu0 0
    %825 = vmatprep.subr.bf16.mxu0 0
    %826 = vmatpush1.bf16.msra.mxu0 0
    %827 = vmatprep.subr.bf16.mxu0 0
    %828 = vmatpush1.bf16.msra.mxu0 0
    %829 = vmatprep.subr.bf16.mxu0 0
    %830 = vmatpush1.bf16.msra.mxu0 0
    %831 = vmatprep.subr.bf16.mxu0 0
    %832 = vmatpush1.bf16.msra.mxu0 0
    %833 = vmatprep.subr.bf16.mxu0 0
    %834 = vmatpush1.bf16.msra.mxu0 0
    %835 = vmatprep.subr.bf16.mxu0 0
    %836 = vmatpush1.bf16.msra.mxu0 0
    %837 = vmatprep.subr.bf16.mxu0 0
    %838 = vmatpush1.bf16.msra.mxu0 0
    %839 = vmatprep.subr.bf16.mxu0 0
    %840 = vmatpush1.bf16.msra.mxu0 0
    %841 = vmatprep.subr.bf16.mxu0 0
    %842 = vmatpush1.bf16.msra.mxu0 0
    %843 = vmatprep.mubr.bf16.mxu0 0
    %844 = vmatmul.mubr.bf16.gmra.mrb[0].mxu0 %v809
    %v845 = vpop.f32.mrb[0].mxu0
    %v846 = vadd.f32 %v803, %v845
    %v847 = vpop.f32.mrb[0].mxu0
    %v848 = vpop.f32.mrb[0].mxu0
    %v849 = vpop.f32.mrb[0].mxu0
    %850 = vdwg.mxu0
    %v851 = vadd.f32 %v846, %v131
    %v852 = vmax.f32 %v851, 0.0
    %v853 = vpack.c.bf16 %v852, %v852
    %v855 = vsel %vm302, %v853, 0
    %857 = vmatprep.subr.bf16.mxu0 %v287
    %858 = vmatpush1.bf16.msra.mxu0 %v286
    %859 = vmatprep.subr.bf16.mxu0 %v289
    %860 = vmatpush1.bf16.msra.mxu0 %v288
    %861 = vmatprep.subr.bf16.mxu0 %v291
    %862 = vmatpush1.bf16.msra.mxu0 %v290
    %863 = vmatprep.subr.bf16.mxu0 %v293
    %864 = vmatpush1.bf16.msra.mxu0 %v292
    %865 = vmatprep.subr.bf16.mxu0 0
    %866 = vmatpush1.bf16.msra.mxu0 0
    %867 = vmatprep.subr.bf16.mxu0 0
    %868 = vmatpush1.bf16.msra.mxu0 0
    %869 = vmatprep.subr.bf16.mxu0 0
    %870 = vmatpush1.bf16.msra.mxu0 0
    %871 = vmatprep.subr.bf16.mxu0 0
    %872 = vmatpush1.bf16.msra.mxu0 0
    %873 = vmatprep.subr.bf16.mxu0 0
    %874 = vmatpush1.bf16.msra.mxu0 0
    %875 = vmatprep.subr.bf16.mxu0 0
    %876 = vmatpush1.bf16.msra.mxu0 0
    %877 = vmatprep.subr.bf16.mxu0 0
    %878 = vmatpush1.bf16.msra.mxu0 0
    %879 = vmatprep.subr.bf16.mxu0 0
    %880 = vmatpush1.bf16.msra.mxu0 0
    %881 = vmatprep.subr.bf16.mxu0 0
    %882 = vmatpush1.bf16.msra.mxu0 0
    %883 = vmatprep.subr.bf16.mxu0 0
    %884 = vmatpush1.bf16.msra.mxu0 0
    %885 = vmatprep.subr.bf16.mxu0 0
    %886 = vmatpush1.bf16.msra.mxu0 0
    %887 = vmatprep.subr.bf16.mxu0 0
    %888 = vmatpush1.bf16.msra.mxu0 0
    %889 = vmatprep.mubr.bf16.mxu0 0
    %890 = vmatmul.mubr.bf16.gmra.mrb[0].mxu0 %v855
    %v891 = vpop.f32.mrb[0].mxu0
    %v892 = vadd.f32 %v138, %v891
    %v893 = vpop.f32.mrb[0].mxu0
    %v894 = vadd.f32 %v142, %v893
    %v895 = vpop.f32.mrb[0].mxu0
    %v896 = vpop.f32.mrb[0].mxu0
    %897 = vdwg.mxu0
    %s898 = scalar_lea.vmem [#allocation12], 32
    %899 = vst [vmem:[%s898] sm:$0xff] %v894
    %s900 = scalar_lea.vmem [#allocation6], 20
    %v901 = vld [vmem:[%s900] sm:$0xf]
    %v902 = vpack.c.bf16 %v892, %v892
    %v904 = vsel %vm160, %v902, 0
    %906 = vmatprep.subr.bf16.mxu0 0
    %907 = vmatpush1.bf16.msra.mxu0 %v156
    %908 = vmatprep.subr.bf16.mxu0 0
    %909 = vmatpush1.bf16.msra.mxu0 %v157
    %910 = vmatprep.subr.bf16.mxu0 0
    %911 = vmatpush1.bf16.msra.mxu0 0
    %912 = vmatprep.subr.bf16.mxu0 0
    %913 = vmatpush1.bf16.msra.mxu0 0
    %914 = vmatprep.subr.bf16.mxu0 0
    %915 = vmatpush1.bf16.msra.mxu0 0
    %916 = vmatprep.subr.bf16.mxu0 0
    %917 = vmatpush1.bf16.msra.mxu0 0
    %918 = vmatprep.subr.bf16.mxu0 0
    %919 = vmatpush1.bf16.msra.mxu0 0
    %920 = vmatprep.subr.bf16.mxu0 0
    %921 = vmatpush1.bf16.msra.mxu0 0
    %922 = vmatprep.subr.bf16.mxu0 0
    %923 = vmatpush1.bf16.msra.mxu0 0
    %924 = vmatprep.subr.bf16.mxu0 0
    %925 = vmatpush1.bf16.msra.mxu0 0
    %926 = vmatprep.subr.bf16.mxu0 0
    %927 = vmatpush1.bf16.msra.mxu0 0
    %928 = vmatprep.subr.bf16.mxu0 0
    %929 = vmatpush1.bf16.msra.mxu0 0
    %930 = vmatprep.subr.bf16.mxu0 0
    %931 = vmatpush1.bf16.msra.mxu0 0
    %932 = vmatprep.subr.bf16.mxu0 0
    %933 = vmatpush1.bf16.msra.mxu0 0
    %934 = vmatprep.subr.bf16.mxu0 0
    %935 = vmatpush1.bf16.msra.mxu0 0
    %936 = vmatprep.subr.bf16.mxu0 0
    %937 = vmatpush1.bf16.msra.mxu0 0
    %938 = vmatprep.mubr.bf16.mxu0 0
    %939 = vmatmul.mubr.bf16.gmra.mrb[0].mxu0 %v904
    %v940 = vpop.f32.mrb[0].mxu0
    %v941 = vadd.f32 0.0, %v940
    %v942 = vpop.f32.mrb[0].mxu0
    %v943 = vpop.f32.mrb[0].mxu0
    %v944 = vpop.f32.mrb[0].mxu0
    %945 = vdwg.mxu0
    %v947 = vsel %vm160, %v901, 0
    %949 = vmatprep.subr.bf16.mxu0 0
    %950 = vmatpush1.bf16.msra.mxu0 %v212
    %951 = vmatprep.subr.bf16.mxu0 0
    %952 = vmatpush1.bf16.msra.mxu0 %v213
    %953 = vmatprep.subr.bf16.mxu0 0
    %954 = vmatpush1.bf16.msra.mxu0 0
    %955 = vmatprep.subr.bf16.mxu0 0
    %956 = vmatpush1.bf16.msra.mxu0 0
    %957 = vmatprep.subr.bf16.mxu0 0
    %958 = vmatpush1.bf16.msra.mxu0 0
    %959 = vmatprep.subr.bf16.mxu0 0
    %960 = vmatpush1.bf16.msra.mxu0 0
    %961 = vmatprep.subr.bf16.mxu0 0
    %962 = vmatpush1.bf16.msra.mxu0 0
    %963 = vmatprep.subr.bf16.mxu0 0
    %964 = vmatpush1.bf16.msra.mxu0 0
    %965 = vmatprep.subr.bf16.mxu0 0
    %966 = vmatpush1.bf16.msra.mxu0 0
    %967 = vmatprep.subr.bf16.mxu0 0
    %968 = vmatpush1.bf16.msra.mxu0 0
    %969 = vmatprep.subr.bf16.mxu0 0
    %970 = vmatpush1.bf16.msra.mxu0 0
    %971 = vmatprep.subr.bf16.mxu0 0
    %972 = vmatpush1.bf16.msra.mxu0 0
    %973 = vmatprep.subr.bf16.mxu0 0
    %974 = vmatpush1.bf16.msra.mxu0 0
    %975 = vmatprep.subr.bf16.mxu0 0
    %976 = vmatpush1.bf16.msra.mxu0 0
    %977 = vmatprep.subr.bf16.mxu0 0
    %978 = vmatpush1.bf16.msra.mxu0 0
    %979 = vmatprep.subr.bf16.mxu0 0
    %980 = vmatpush1.bf16.msra.mxu0 0
    %981 = vmatprep.mubr.bf16.mxu0 0
    %982 = vmatmul.mubr.bf16.gmra.mrb[0].mxu0 %v947
    %v983 = vpop.f32.mrb[0].mxu0
    %v984 = vadd.f32 %v941, %v983
    %v985 = vpop.f32.mrb[0].mxu0
    %v986 = vpop.f32.mrb[0].mxu0
    %v987 = vpop.f32.mrb[0].mxu0
    %988 = vdwg.mxu0
    %v989 = vadd.f32 %v984, %v131
    %v990 = vmax.f32 %v989, 0.0
    %v991 = vpack.c.bf16 %v990, %v990
    %v993 = vsel %vm302, %v991, 0
    %995 = vmatprep.subr.bf16.mxu0 %v287
    %996 = vmatpush1.bf16.msra.mxu0 %v286
    %997 = vmatprep.subr.bf16.mxu0 %v289
    %998 = vmatpush1.bf16.msra.mxu0 %v288
    %999 = vmatprep.subr.bf16.mxu0 %v291
    %1000 = vmatpush1.bf16.msra.mxu0 %v290
    %1001 = vmatprep.subr.bf16.mxu0 %v293
    %1002 = vmatpush1.bf16.msra.mxu0 %v292
    %1003 = vmatprep.subr.bf16.mxu0 0
    %1004 = vmatpush1.bf16.msra.mxu0 0
    %1005 = vmatprep.subr.bf16.mxu0 0
    %1006 = vmatpush1.bf16.msra.mxu0 0
    %1007 = vmatprep.subr.bf16.mxu0 0
    %1008 = vmatpush1.bf16.msra.mxu0 0
    %1009 = vmatprep.subr.bf16.mxu0 0
    %1010 = vmatpush1.bf16.msra.mxu0 0
    %1011 = vmatprep.subr.bf16.mxu0 0
    %1012 = vmatpush1.bf16.msra.mxu0 0
    %1013 = vmatprep.subr.bf16.mxu0 0
    %1014 = vmatpush1.bf16.msra.mxu0 0
    %1015 = vmatprep.subr.bf16.mxu0 0
    %1016 = vmatpush1.bf16.msra.mxu0 0
    %1017 = vmatprep.subr.bf16.mxu0 0
    %1018 = vmatpush1.bf16.msra.mxu0 0
    %1019 = vmatprep.subr.bf16.mxu0 0
    %1020 = vmatpush1.bf16.msra.mxu0 0
    %1021 = vmatprep.subr.bf16.mxu0 0
    %1022 = vmatpush1.bf16.msra.mxu0 0
    %1023 = vmatprep.subr.bf16.mxu0 0
    %1024 = vmatpush1.bf16.msra.mxu0 0
    %1025 = vmatprep.subr.bf16.mxu0 0
    %1026 = vmatpush1.bf16.msra.mxu0 0
    %1027 = vmatprep.mubr.bf16.mxu0 0
    %1028 = vmatmul.mubr.bf16.gmra.mrb[0].mxu0 %v993
    %v1029 = vpop.f32.mrb[0].mxu0
    %v1030 = vadd.f32 %v138, %v1029
    %v1031 = vpop.f32.mrb[0].mxu0
    %v1032 = vadd.f32 %v142, %v1031
    %v1033 = vpop.f32.mrb[0].mxu0
    %v1034 = vpop.f32.mrb[0].mxu0
    %1035 = vdwg.mxu0
    %s1036 = scalar_lea.vmem [#allocation12], 40
    %1037 = vst [vmem:[%s1036] sm:$0xff] %v1032
    %s1038 = scalar_lea.vmem [#allocation6], 24
    %v1039 = vld [vmem:[%s1038] sm:$0xf]
    %v1040 = vpack.c.bf16 %v1030, %v1030
    %v1042 = vsel %vm160, %v1040, 0
    %1044 = vmatprep.subr.bf16.mxu0 0
    %1045 = vmatpush1.bf16.msra.mxu0 %v156
    %1046 = vmatprep.subr.bf16.mxu0 0
    %1047 = vmatpush1.bf16.msra.mxu0 %v157
    %1048 = vmatprep.subr.bf16.mxu0 0
    %1049 = vmatpush1.bf16.msra.mxu0 0
    %1050 = vmatprep.subr.bf16.mxu0 0
    %1051 = vmatpush1.bf16.msra.mxu0 0
    %1052 = vmatprep.subr.bf16.mxu0 0
    %1053 = vmatpush1.bf16.msra.mxu0 0
    %1054 = vmatprep.subr.bf16.mxu0 0
    %1055 = vmatpush1.bf16.msra.mxu0 0
    %1056 = vmatprep.subr.bf16.mxu0 0
    %1057 = vmatpush1.bf16.msra.mxu0 0
    %1058 = vmatprep.subr.bf16.mxu0 0
    %1059 = vmatpush1.bf16.msra.mxu0 0
    %1060 = vmatprep.subr.bf16.mxu0 0
    %1061 = vmatpush1.bf16.msra.mxu0 0
    %1062 = vmatprep.subr.bf16.mxu0 0
    %1063 = vmatpush1.bf16.msra.mxu0 0
    %1064 = vmatprep.subr.bf16.mxu0 0
    %1065 = vmatpush1.bf16.msra.mxu0 0
    %1066 = vmatprep.subr.bf16.mxu0 0
    %1067 = vmatpush1.bf16.msra.mxu0 0
    %1068 = vmatprep.subr.bf16.mxu0 0
    %1069 = vmatpush1.bf16.msra.mxu0 0
    %1070 = vmatprep.subr.bf16.mxu0 0
    %1071 = vmatpush1.bf16.msra.mxu0 0
    %1072 = vmatprep.subr.bf16.mxu0 0
    %1073 = vmatpush1.bf16.msra.mxu0 0
    %1074 = vmatprep.subr.bf16.mxu0 0
    %1075 = vmatpush1.bf16.msra.mxu0 0
    %1076 = vmatprep.mubr.bf16.mxu0 0
    %1077 = vmatmul.mubr.bf16.gmra.mrb[0].mxu0 %v1042
    %v1078 = vpop.f32.mrb[0].mxu0
    %v1079 = vadd.f32 0.0, %v1078
    %v1080 = vpop.f32.mrb[0].mxu0
    %v1081 = vpop.f32.mrb[0].mxu0
    %v1082 = vpop.f32.mrb[0].mxu0
    %1083 = vdwg.mxu0
    %v1085 = vsel %vm160, %v1039, 0
    %1087 = vmatprep.subr.bf16.mxu0 0
    %1088 = vmatpush1.bf16.msra.mxu0 %v212
    %1089 = vmatprep.subr.bf16.mxu0 0
    %1090 = vmatpush1.bf16.msra.mxu0 %v213
    %1091 = vmatprep.subr.bf16.mxu0 0
    %1092 = vmatpush1.bf16.msra.mxu0 0
    %1093 = vmatprep.subr.bf16.mxu0 0
    %1094 = vmatpush1.bf16.msra.mxu0 0
    %1095 = vmatprep.subr.bf16.mxu0 0
    %1096 = vmatpush1.bf16.msra.mxu0 0
    %1097 = vmatprep.subr.bf16.mxu0 0
    %1098 = vmatpush1.bf16.msra.mxu0 0
    %1099 = vmatprep.subr.bf16.mxu0 0
    %1100 = vmatpush1.bf16.msra.mxu0 0
    %1101 = vmatprep.subr.bf16.mxu0 0
    %1102 = vmatpush1.bf16.msra.mxu0 0
    %1103 = vmatprep.subr.bf16.mxu0 0
    %1104 = vmatpush1.bf16.msra.mxu0 0
    %1105 = vmatprep.subr.bf16.mxu0 0
    %1106 = vmatpush1.bf16.msra.mxu0 0
    %1107 = vmatprep.subr.bf16.mxu0 0
    %1108 = vmatpush1.bf16.msra.mxu0 0
    %1109 = vmatprep.subr.bf16.mxu0 0
    %1110 = vmatpush1.bf16.msra.mxu0 0
    %1111 = vmatprep.subr.bf16.mxu0 0
    %1112 = vmatpush1.bf16.msra.mxu0 0
    %1113 = vmatprep.subr.bf16.mxu0 0
    %1114 = vmatpush1.bf16.msra.mxu0 0
    %1115 = vmatprep.subr.bf16.mxu0 0
    %1116 = vmatpush1.bf16.msra.mxu0 0
    %1117 = vmatprep.subr.bf16.mxu0 0
    %1118 = vmatpush1.bf16.msra.mxu0 0
    %1119 = vmatprep.mubr.bf16.mxu0 0
    %1120 = vmatmul.mubr.bf16.gmra.mrb[0].mxu0 %v1085
    %v1121 = vpop.f32.mrb[0].mxu0
    %v1122 = vadd.f32 %v1079, %v1121
    %v1123 = vpop.f32.mrb[0].mxu0
    %v1124 = vpop.f32.mrb[0].mxu0
    %v1125 = vpop.f32.mrb[0].mxu0
    %1126 = vdwg.mxu0
    %v1127 = vadd.f32 %v1122, %v131
    %v1128 = vmax.f32 %v1127, 0.0
    %v1129 = vpack.c.bf16 %v1128, %v1128
    %v1131 = vsel %vm302, %v1129, 0
    %1133 = vmatprep.subr.bf16.mxu0 %v287
    %1134 = vmatpush1.bf16.msra.mxu0 %v286
    %1135 = vmatprep.subr.bf16.mxu0 %v289
    %1136 = vmatpush1.bf16.msra.mxu0 %v288
    %1137 = vmatprep.subr.bf16.mxu0 %v291
    %1138 = vmatpush1.bf16.msra.mxu0 %v290
    %1139 = vmatprep.subr.bf16.mxu0 %v293
    %1140 = vmatpush1.bf16.msra.mxu0 %v292
    %1141 = vmatprep.subr.bf16.mxu0 0
    %1142 = vmatpush1.bf16.msra.mxu0 0
    %1143 = vmatprep.subr.bf16.mxu0 0
    %1144 = vmatpush1.bf16.msra.mxu0 0
    %1145 = vmatprep.subr.bf16.mxu0 0
    %1146 = vmatpush1.bf16.msra.mxu0 0
    %1147 = vmatprep.subr.bf16.mxu0 0
    %1148 = vmatpush1.bf16.msra.mxu0 0
    %1149 = vmatprep.subr.bf16.mxu0 0
    %1150 = vmatpush1.bf16.msra.mxu0 0
    %1151 = vmatprep.subr.bf16.mxu0 0
    %1152 = vmatpush1.bf16.msra.mxu0 0
    %1153 = vmatprep.subr.bf16.mxu0 0
    %1154 = vmatpush1.bf16.msra.mxu0 0
    %1155 = vmatprep.subr.bf16.mxu0 0
    %1156 = vmatpush1.bf16.msra.mxu0 0
    %1157 = vmatprep.subr.bf16.mxu0 0
    %1158 = vmatpush1.bf16.msra.mxu0 0
    %1159 = vmatprep.subr.bf16.mxu0 0
    %1160 = vmatpush1.bf16.msra.mxu0 0
    %1161 = vmatprep.subr.bf16.mxu0 0
    %1162 = vmatpush1.bf16.msra.mxu0 0
    %1163 = vmatprep.subr.bf16.mxu0 0
    %1164 = vmatpush1.bf16.msra.mxu0 0
    %1165 = vmatprep.mubr.bf16.mxu0 0
    %1166 = vmatmul.mubr.bf16.gmra.mrb[0].mxu0 %v1131
    %v1167 = vpop.f32.mrb[0].mxu0
    %v1168 = vadd.f32 %v138, %v1167
    %v1169 = vpop.f32.mrb[0].mxu0
    %v1170 = vadd.f32 %v142, %v1169
    %v1171 = vpop.f32.mrb[0].mxu0
    %v1172 = vpop.f32.mrb[0].mxu0
    %1173 = vdwg.mxu0
    %s1174 = scalar_lea.vmem [#allocation12], 48
    %1175 = vst [vmem:[%s1174] sm:$0xff] %v1170
    %s1176 = scalar_lea.vmem [#allocation6], 28
    %v1177 = vld [vmem:[%s1176] sm:$0xf]
    %v1178 = vpack.c.bf16 %v1168, %v1168
    %v1180 = vsel %vm160, %v1178, 0
    %1182 = vmatprep.subr.bf16.mxu0 0
    %1183 = vmatpush1.bf16.msra.mxu0 %v156
    %1184 = vmatprep.subr.bf16.mxu0 0
    %1185 = vmatpush1.bf16.msra.mxu0 %v157
    %1186 = vmatprep.subr.bf16.mxu0 0
    %1187 = vmatpush1.bf16.msra.mxu0 0
    %1188 = vmatprep.subr.bf16.mxu0 0
    %1189 = vmatpush1.bf16.msra.mxu0 0
    %1190 = vmatprep.subr.bf16.mxu0 0
    %1191 = vmatpush1.bf16.msra.mxu0 0
    %1192 = vmatprep.subr.bf16.mxu0 0
    %1193 = vmatpush1.bf16.msra.mxu0 0
    %1194 = vmatprep.subr.bf16.mxu0 0
    %1195 = vmatpush1.bf16.msra.mxu0 0
    %1196 = vmatprep.subr.bf16.mxu0 0
    %1197 = vmatpush1.bf16.msra.mxu0 0
    %1198 = vmatprep.subr.bf16.mxu0 0
    %1199 = vmatpush1.bf16.msra.mxu0 0
    %1200 = vmatprep.subr.bf16.mxu0 0
    %1201 = vmatpush1.bf16.msra.mxu0 0
    %1202 = vmatprep.subr.bf16.mxu0 0
    %1203 = vmatpush1.bf16.msra.mxu0 0
    %1204 = vmatprep.subr.bf16.mxu0 0
    %1205 = vmatpush1.bf16.msra.mxu0 0
    %1206 = vmatprep.subr.bf16.mxu0 0
    %1207 = vmatpush1.bf16.msra.mxu0 0
    %1208 = vmatprep.subr.bf16.mxu0 0
    %1209 = vmatpush1.bf16.msra.mxu0 0
    %1210 = vmatprep.subr.bf16.mxu0 0
    %1211 = vmatpush1.bf16.msra.mxu0 0
    %1212 = vmatprep.subr.bf16.mxu0 0
    %1213 = vmatpush1.bf16.msra.mxu0 0
    %1214 = vmatprep.mubr.bf16.mxu0 0
    %1215 = vmatmul.mubr.bf16.gmra.mrb[0].mxu0 %v1180
    %v1216 = vpop.f32.mrb[0].mxu0
    %v1217 = vadd.f32 0.0, %v1216
    %v1218 = vpop.f32.mrb[0].mxu0
    %v1219 = vpop.f32.mrb[0].mxu0
    %v1220 = vpop.f32.mrb[0].mxu0
    %1221 = vdwg.mxu0
    %v1223 = vsel %vm160, %v1177, 0
    %1225 = vmatprep.subr.bf16.mxu0 0
    %1226 = vmatpush1.bf16.msra.mxu0 %v212
    %1227 = vmatprep.subr.bf16.mxu0 0
    %1228 = vmatpush1.bf16.msra.mxu0 %v213
    %1229 = vmatprep.subr.bf16.mxu0 0
    %1230 = vmatpush1.bf16.msra.mxu0 0
    %1231 = vmatprep.subr.bf16.mxu0 0
    %1232 = vmatpush1.bf16.msra.mxu0 0
    %1233 = vmatprep.subr.bf16.mxu0 0
    %1234 = vmatpush1.bf16.msra.mxu0 0
    %1235 = vmatprep.subr.bf16.mxu0 0
    %1236 = vmatpush1.bf16.msra.mxu0 0
    %1237 = vmatprep.subr.bf16.mxu0 0
    %1238 = vmatpush1.bf16.msra.mxu0 0
    %1239 = vmatprep.subr.bf16.mxu0 0
    %1240 = vmatpush1.bf16.msra.mxu0 0
    %1241 = vmatprep.subr.bf16.mxu0 0
    %1242 = vmatpush1.bf16.msra.mxu0 0
    %1243 = vmatprep.subr.bf16.mxu0 0
    %1244 = vmatpush1.bf16.msra.mxu0 0
    %1245 = vmatprep.subr.bf16.mxu0 0
    %1246 = vmatpush1.bf16.msra.mxu0 0
    %1247 = vmatprep.subr.bf16.mxu0 0
    %1248 = vmatpush1.bf16.msra.mxu0 0
    %1249 = vmatprep.subr.bf16.mxu0 0
    %1250 = vmatpush1.bf16.msra.mxu0 0
    %1251 = vmatprep.subr.bf16.mxu0 0
    %1252 = vmatpush1.bf16.msra.mxu0 0
    %1253 = vmatprep.subr.bf16.mxu0 0
    %1254 = vmatpush1.bf16.msra.mxu0 0
    %1255 = vmatprep.subr.bf16.mxu0 0
    %1256 = vmatpush1.bf16.msra.mxu0 0
    %1257 = vmatprep.mubr.bf16.mxu0 0
    %1258 = vmatmul.mubr.bf16.gmra.mrb[0].mxu0 %v1223
    %v1259 = vpop.f32.mrb[0].mxu0
    %v1260 = vadd.f32 %v1217, %v1259
    %v1261 = vpop.f32.mrb[0].mxu0
    %v1262 = vpop.f32.mrb[0].mxu0
    %v1263 = vpop.f32.mrb[0].mxu0
    %1264 = vdwg.mxu0
    %v1265 = vadd.f32 %v1260, %v131
    %v1266 = vmax.f32 %v1265, 0.0
    %v1267 = vpack.c.bf16 %v1266, %v1266
    %v1269 = vsel %vm302, %v1267, 0
    %1271 = vmatprep.subr.bf16.mxu0 %v287
    %1272 = vmatpush1.bf16.msra.mxu0 %v286
    %1273 = vmatprep.subr.bf16.mxu0 %v289
    %1274 = vmatpush1.bf16.msra.mxu0 %v288
    %1275 = vmatprep.subr.bf16.mxu0 %v291
    %1276 = vmatpush1.bf16.msra.mxu0 %v290
    %1277 = vmatprep.subr.bf16.mxu0 %v293
    %1278 = vmatpush1.bf16.msra.mxu0 %v292
    %1279 = vmatprep.subr.bf16.mxu0 0
    %1280 = vmatpush1.bf16.msra.mxu0 0
    %1281 = vmatprep.subr.bf16.mxu0 0
    %1282 = vmatpush1.bf16.msra.mxu0 0
    %1283 = vmatprep.subr.bf16.mxu0 0
    %1284 = vmatpush1.bf16.msra.mxu0 0
    %1285 = vmatprep.subr.bf16.mxu0 0
    %1286 = vmatpush1.bf16.msra.mxu0 0
    %1287 = vmatprep.subr.bf16.mxu0 0
    %1288 = vmatpush1.bf16.msra.mxu0 0
    %1289 = vmatprep.subr.bf16.mxu0 0
    %1290 = vmatpush1.bf16.msra.mxu0 0
    %1291 = vmatprep.subr.bf16.mxu0 0
    %1292 = vmatpush1.bf16.msra.mxu0 0
    %1293 = vmatprep.subr.bf16.mxu0 0
    %1294 = vmatpush1.bf16.msra.mxu0 0
    %1295 = vmatprep.subr.bf16.mxu0 0
    %1296 = vmatpush1.bf16.msra.mxu0 0
    %1297 = vmatprep.subr.bf16.mxu0 0
    %1298 = vmatpush1.bf16.msra.mxu0 0
    %1299 = vmatprep.subr.bf16.mxu0 0
    %1300 = vmatpush1.bf16.msra.mxu0 0
    %1301 = vmatprep.subr.bf16.mxu0 0
    %1302 = vmatpush1.bf16.msra.mxu0 0
    %1303 = vmatprep.mubr.bf16.mxu0 0
    %1304 = vmatmul.mubr.bf16.gmra.mrb[0].mxu0 %v1269
    %v1305 = vpop.f32.mrb[0].mxu0
    %v1306 = vadd.f32 %v138, %v1305
    %v1307 = vpop.f32.mrb[0].mxu0
    %v1308 = vadd.f32 %v142, %v1307
    %v1309 = vpop.f32.mrb[0].mxu0
    %v1310 = vpop.f32.mrb[0].mxu0
    %1311 = vdwg.mxu0
    %s1312 = scalar_lea.vmem [#allocation12], 56
    %1313 = vst [vmem:[%s1312] sm:$0xff] %v1308
    %1314 = vst.msk [vmem:[#allocation2] sm:$0xff] %vm160, %v1306
    // Predicated region
    $region54: #{tpu_custom_call.1} parent=1 // pred_check
      %p1315 = pneg %p97
    $region55: #{tpu_custom_call.1} parent=1 // pred_check_branch
      %1317 = sbr.rel (%p1315) target = $region57
    $region56: #{tpu_custom_call.1} parent=1 // pred_region
      %1318 = vst.msk [vmem:[#allocation13] sm:$0xff] %vm160, %v1306
    $region57: #{tpu_custom_call.1} parent=1 // pred_fallthru
      _
    // Predicated region
    $region58: #{tpu_custom_call.1} parent=1 // pred_check
      _
    $region59: #{tpu_custom_call.1} parent=1 // pred_check_branch
      %1320 = sbr.rel (0) target = $region61
    $region60: #{tpu_custom_call.1} parent=1 // pred_region
      %s1322 = ssub.s32 1024, 1024
      %1323 = vsyncadd [#allocation5], %s1322
      %s1324 = sshll.u32 [#allocation12], 4
      %s1325 = int_to_ptr.vmem [resolvable:$true] %s1324
      %1330 = dma.vmem_to_hbm [thread:$0]  %s1325, 1024, %s7, [#allocation5], 128, 128, 8
    $region61: #{tpu_custom_call.1} parent=1 // pred_fallthru
      _
    // Predicated region
    $region62: #{tpu_custom_call.1} parent=1 // pred_check
      _
    $region63: #{tpu_custom_call.1} parent=1 // pred_check_branch
      %1332 = sbr.rel (0) target = $region65
    $region64: #{tpu_custom_call.1} parent=1 // pred_region
      %s1334 = ssub.s32 128, 128
      %1335 = vsyncadd [#allocation14], %s1334
      %s1337 = sshll.u32 [#allocation13], 4
      %s1338 = int_to_ptr.vmem [resolvable:$true] %s1337
      %1340 = dma.vmem_to_hbm [thread:$0]  %s1338, 128, %s8, [#allocation14]
    $region65: #{tpu_custom_call.1} parent=1 // pred_fallthru
      _
    // Predicated region
    $region66: #{tpu_custom_call.1} parent=1 // pred_check
      _
    $region67: #{tpu_custom_call.1} parent=1 // pred_check_branch
      %1342 = sbr.rel (0) target = $region69
    $region68: #{tpu_custom_call.1} parent=1 // pred_region
      %1343 = dma.done [#allocation5], 1024
    $region69: #{tpu_custom_call.1} parent=1 // pred_fallthru
      _
    // Predicated region
    $region70: #{tpu_custom_call.1} parent=1 // pred_check
      _
    $region71: #{tpu_custom_call.1} parent=1 // pred_check_branch
      %1345 = sbr.rel (0) target = $region73
    $region72: #{tpu_custom_call.1} parent=1 // pred_region
      %1346 = dma.done [#allocation14], 128
    $region73: #{tpu_custom_call.1} parent=1 // pred_fallthru
      _
    %1347 = vsyncpa [#allocation4], 1
    %1348 = vsyncpa [#allocation7], 1
    %1349 = vsyncpa [#allocation10], 1
    %1350 = vsyncpa [#allocation5], 1
    %1351 = vsyncpa [#allocation14], 1

</llo_original>
